<compile_context>
chip_gen: v7x
topology: tpu7x:2x2x1
jax: 0.10.0
libtpu: 0.0.40
codegen_flags: <defaults>
</compile_context>

<pallas_src>
import jax
import jax.numpy as jnp
from jax.experimental import pallas as pl
from jax.experimental.pallas import tpu as pltpu

LANE = 128
BF16_SUBLANES = 16


def _round_up(x, m):
    return (x + m - 1) // m * m


def _choose_block_b(batch):
    """Batch tile: multiple of 16 sublanes (bf16 vreg), >=2 grid steps when the
    batch allows it (v7x megacore = 2 TensorCores), capped at 256 rows to
    amortize per-step overhead on the 256-wide v6e/v7x MXUs."""
    if batch <= BF16_SUBLANES:
        return BF16_SUBLANES
    if batch <= 512:
        return _round_up((batch + 1) // 2, BF16_SUBLANES)
    return 256


def _const_spec(block_shape, single_buffer):
    """BlockSpec for a grid-invariant operand (weights / bias): constant
    index_map (never re-DMA'd after the first grid step) and, when requested,
    a single VMEM buffer instead of the default double buffer."""
    ndim = len(block_shape)
    index_map = lambda *_: (0,) * ndim
    if single_buffer:
        return pl.BlockSpec(block_shape, index_map,
                            pipeline_mode=pl.Buffered(buffer_count=1))
    return pl.BlockSpec(block_shape, index_map)


def _vmem_limit(block_bytes):
    """Explicit scoped-VMEM limit: real footprint + headroom, clamped to stay
    sane across v5e/v6e (128 MiB) and v7x (64 MiB physical)."""
    need = int(block_bytes) + (4 << 20)
    return max(min(need, 112 << 20), 24 << 20)


# ---------------------------------------------------------------------------
# Shared gate math (f32 on VPU/EUP, lane-aligned Hp slices)
# ---------------------------------------------------------------------------
def _lstm_gate_math(gates, cx, hp):
    """sigmoid(x) = 0.5*tanh(0.5x)+0.5 -> one EUP transcendental per gate."""
    i_pre = gates[:, 0 * hp:1 * hp]
    f_pre = gates[:, 1 * hp:2 * hp]
    g_pre = gates[:, 2 * hp:3 * hp]
    o_pre = gates[:, 3 * hp:4 * hp]
    ingate = 0.5 * jnp.tanh(0.5 * i_pre) + 0.5
    forgetgate = 0.5 * jnp.tanh(0.5 * f_pre) + 0.5
    outgate = 0.5 * jnp.tanh(0.5 * o_pre) + 0.5
    cellgate = jnp.tanh(g_pre)
    cy = forgetgate * cx + ingate * cellgate
    hy = outgate * jnp.tanh(cy)
    return hy, cy


# ---------------------------------------------------------------------------
# Single-step kernel (the module's forward)
# ---------------------------------------------------------------------------
def _lstm_step_kernel(x_ref, h_ref, c_ref, wx_ref, wh_ref, b_ref, hy_ref, cy_ref):
    # Two accumulating MXU passes (input + recurrent weights), f32 accumulation.
    gates = jnp.dot(x_ref[...], wx_ref[...], preferred_element_type=jnp.float32)
    gates = gates + jnp.dot(h_ref[...], wh_ref[...],
                            preferred_element_type=jnp.float32)
    gates = gates + b_ref[...]
    hy, cy = _lstm_gate_math(gates, c_ref[...], hy_ref.shape[-1])
    hy_ref[...] = hy.astype(hy_ref.dtype)
    cy_ref[...] = cy.astype(cy_ref.dtype)


def lstm_cell_pallas(inp, hx, cx, wx_fused, wh_fused, b_fused):
    """One LSTMCell step.

    inp: [B, input_size] f32, hx/cx: [B, H] f32.
    wx_fused: [input_size, 4*Hp] bf16, wh_fused: [Hp, 4*Hp] bf16,
    b_fused: [1, 4*Hp] f32 (from pack_lstm_params).
    Returns (hy, hy, cy) matching the PyTorch module forward.
    """
    B, in_size = inp.shape
    _, H = hx.shape
    four_hp = wx_fused.shape[1]
    Hp = four_hp // 4

    block_B = _choose_block_b(B)
    Bp = _round_up(B, block_B)
    grid = (Bp // block_B,)

    # Only batch padding + bf16 cast on the host (no concat, no feature pad of x).
    x_p = jnp.pad(inp, ((0, Bp - B), (0, 0))).astype(jnp.bfloat16)
    h_p = jnp.pad(hx, ((0, Bp - B), (0, Hp - H))).astype(jnp.bfloat16)
    c_p = jnp.pad(cx.astype(jnp.float32), ((0, Bp - B), (0, Hp - H)))

    block_bytes = (
        wx_fused.size * 2 + wh_fused.size * 2 + b_fused.size * 4       # single-buffered
        + 2 * block_B * (in_size * 2 + Hp * 2 + Hp * 4)                # x, h, c (2 bufs)
        + 2 * 2 * block_B * Hp * 4                                     # hy, cy (2 bufs)
        + block_B * four_hp * 4                                        # f32 gates slab
    )
    compiler_params = pltpu.CompilerParams(
        dimension_semantics=("parallel",),
        vmem_limit_bytes=_vmem_limit(block_bytes),
    )
    cost = pl.CostEstimate(
        flops=2 * Bp * (in_size + Hp) * four_hp,
        transcendentals=5 * Bp * Hp,
        bytes_accessed=(x_p.size * 2 + h_p.size * 2 + c_p.size * 4
                        + wx_fused.size * 2 + wh_fused.size * 2 + b_fused.size * 4
                        + 2 * Bp * Hp * 4),
    )

    def build(single_buffer):
        return pl.pallas_call(
            _lstm_step_kernel,
            grid=grid,
            in_specs=[
                pl.BlockSpec((block_B, in_size), lambda i: (i, 0)),     # x
                pl.BlockSpec((block_B, Hp), lambda i: (i, 0)),          # hx
                pl.BlockSpec((block_B, Hp), lambda i: (i, 0)),          # cx
                _const_spec((in_size, four_hp), single_buffer),         # Wx (resident)
                _const_spec((Hp, four_hp), single_buffer),              # Wh (resident)
                _const_spec((1, four_hp), single_buffer),               # bias (resident)
            ],
            out_specs=(
                pl.BlockSpec((block_B, Hp), lambda i: (i, 0)),          # hy
                pl.BlockSpec((block_B, Hp), lambda i: (i, 0)),          # cy
            ),
            out_shape=(
                jax.ShapeDtypeStruct((Bp, Hp), jnp.float32),
                jax.ShapeDtypeStruct((Bp, Hp), jnp.float32),
            ),
            compiler_params=compiler_params,
            cost_estimate=cost,
        )

    operands = (x_p, h_p, c_p, wx_fused, wh_fused, b_fused)
    try:
        hy_p, cy_p = build(True)(*operands)
    except Exception:  # fallback if this Pallas build rejects pl.Buffered(1)
        hy_p, cy_p = build(False)(*operands)

    hy = hy_p[:B, :H]
    cy = cy_p[:B, :H]
    return hy, hy, cy


# ---------------------------------------------------------------------------
# Sequence kernel: time loop inside the kernel, weights VMEM-resident
# ---------------------------------------------------------------------------
def _lstm_seq_kernel(x_ref, h0_ref, c0_ref, wx_ref, wh_ref, b_ref,
                     hseq_ref, hy_ref, cy_ref, h_carry, c_carry):
    t = pl.program_id(1)

    @pl.when(t == 0)
    def _():
        h_carry[...] = h0_ref[...]
        c_carry[...] = c0_ref[...]

    gates = jnp.dot(x_ref[0], wx_ref[...], preferred_element_type=jnp.float32)
    gates = gates + jnp.dot(h_carry[...].astype(jnp.bfloat16), wh_ref[...],
                            preferred_element_type=jnp.float32)
    gates = gates + b_ref[...]
    hy, cy = _lstm_gate_math(gates, c_carry[...], hy_ref.shape[-1])

    h_carry[...] = hy
    c_carry[...] = cy
    hseq_ref[0] = hy.astype(hseq_ref.dtype)

    @pl.when(t == pl.num_programs(1) - 1)
    def _():
        hy_ref[...] = hy.astype(hy_ref.dtype)
        cy_ref[...] = cy.astype(cy_ref.dtype)


def lstm_sequence_pallas(x_seq, h0, c0, wx_fused, wh_fused, b_fused):
    """Run the LSTMCell over x_seq [T, B, input_size]: grid = (batch, T) with T
    marked "arbitrary"; weights DMA'd once, h/c carried in VMEM scratch in the
    padded [block_B, Hp] layout for the whole sequence.

    Returns (h_seq [T, B, H], hy [B, H], cy [B, H]).
    """
    T, B, in_size = x_seq.shape
    _, H = h0.shape
    four_hp = wx_fused.shape[1]
    Hp = four_hp // 4

    block_B = _choose_block_b(B)
    Bp = _round_up(B, block_B)
    grid = (Bp // block_B, T)        # batch parallel (outer), time arbitrary (inner)

    x_p = jnp.pad(x_seq, ((0, 0), (0, Bp - B), (0, 0))).astype(jnp.bfloat16)
    h0_p = jnp.pad(h0.astype(jnp.float32), ((0, Bp - B), (0, Hp - H)))
    c0_p = jnp.pad(c0.astype(jnp.float32), ((0, Bp - B), (0, Hp - H)))

    block_bytes = (
        wx_fused.size * 2 + wh_fused.size * 2 + b_fused.size * 4       # single-buffered
        + 2 * block_B * (in_size * 2 + 2 * Hp * 4)                     # x_t, h0, c0
        + 2 * 3 * block_B * Hp * 4                                     # hseq, hy, cy blocks
        + 2 * block_B * Hp * 4                                         # h/c carry scratch
        + block_B * four_hp * 4                                        # f32 gates slab
    )
    compiler_params = pltpu.CompilerParams(
        dimension_semantics=("parallel", "arbitrary"),
        vmem_limit_bytes=_vmem_limit(block_bytes),
    )
    cost = pl.CostEstimate(
        flops=2 * T * Bp * (in_size + Hp) * four_hp,
        transcendentals=5 * T * Bp * Hp,
        bytes_accessed=(x_p.size * 2 + h0_p.size * 4 + c0_p.size * 4
                        + wx_fused.size * 2 + wh_fused.size * 2 + b_fused.size * 4
                        + T * Bp * Hp * 4 + 2 * Bp * Hp * 4),
    )

    def build(single_buffer):
        return pl.pallas_call(
            _lstm_seq_kernel,
            grid=grid,
            in_specs=[
                pl.BlockSpec((1, block_B, in_size), lambda b, t: (t, b, 0)),  # x_t
                pl.BlockSpec((block_B, Hp), lambda b, t: (b, 0)),             # h0
                pl.BlockSpec((block_B, Hp), lambda b, t: (b, 0)),             # c0
                _const_spec((in_size, four_hp), single_buffer),               # Wx
                _const_spec((Hp, four_hp), single_buffer),                    # Wh
                _const_spec((1, four_hp), single_buffer),                     # bias
            ],
            out_specs=(
                pl.BlockSpec((1, block_B, Hp), lambda b, t: (t, b, 0)),       # h_seq
                pl.BlockSpec((block_B, Hp), lambda b, t: (b, 0)),             # hy (final)
                pl.BlockSpec((block_B, Hp), lambda b, t: (b, 0)),             # cy (final)
            ),
            out_shape=(
                jax.ShapeDtypeStruct((T, Bp, Hp), jnp.float32),
                jax.ShapeDtypeStruct((Bp, Hp), jnp.float32),
                jax.ShapeDtypeStruct((Bp, Hp), jnp.float32),
            ),
            scratch_shapes=[
                pltpu.VMEM((block_B, Hp), jnp.float32),   # h carry (f32)
                pltpu.VMEM((block_B, Hp), jnp.float32),   # c carry (f32)
            ],
            compiler_params=compiler_params,
            cost_estimate=cost,
        )

    operands = (x_p, h0_p, c0_p, wx_fused, wh_fused, b_fused)
    try:
        hseq_p, hy_p, cy_p = build(True)(*operands)
    except Exception:  # fallback if this Pallas build rejects pl.Buffered(1)
        hseq_p, hy_p, cy_p = build(False)(*operands)

    return hseq_p[:, :B, :H], hy_p[:B, :H], cy_p[:B, :H]


# ---------------------------------------------------------------------------
# Parameter init / packing (mirrors the PyTorch module's 8 nn.Linear layers)
# ---------------------------------------------------------------------------
def init_lstm_params(key, input_size, hidden_size, dtype=jnp.float32):
    """PyTorch-layout per-gate params: Wx[g]: [H, in], Wh[g]: [H, H], b[g]: [H].
    Gate order: (ingate, forgetgate, cellgate, outgate).  nn.Linear-style
    U(-1/sqrt(fan_in), 1/sqrt(fan_in)); hidden_to_* layers have no bias."""
    keys = jax.random.split(key, 12)
    kx = 1.0 / float(input_size) ** 0.5
    kh = 1.0 / float(hidden_size) ** 0.5
    wx = [jax.random.uniform(keys[g], (hidden_size, input_size), dtype, -kx, kx)
          for g in range(4)]
    bx = [jax.random.uniform(keys[4 + g], (hidden_size,), dtype, -kx, kx)
          for g in range(4)]
    wh = [jax.random.uniform(keys[8 + g], (hidden_size, hidden_size), dtype, -kh, kh)
          for g in range(4)]
    return wx, wh, bx


def pack_lstm_params(wx_list, wh_list, b_list, *, lane=LANE):
    """Fuse + pad + cast per-gate PyTorch params into kernel layout.

    Each gate is padded to Hp = round_up(H, 128) output columns (lane-aligned
    gate slices / outputs); Wh's contraction dim is padded to Hp so the padded
    h state multiplies through directly.  Padded bias cols & Wh rows are zero.
    Returns wx_fused [in, 4*Hp] bf16, wh_fused [Hp, 4*Hp] bf16, b_fused [1, 4*Hp] f32.
    """
    H, _ = wx_list[0].shape
    Hp = _round_up(H, lane)
    wx_blocks, wh_blocks, b_blocks = [], [], []
    for wx_g, wh_g, b_g in zip(wx_list, wh_list, b_list):
        wx_blocks.append(jnp.pad(wx_g.T, ((0, 0), (0, Hp - H))))        # [in, Hp]
        wh_blocks.append(jnp.pad(wh_g.T, ((0, Hp - H), (0, Hp - H))))   # [Hp, Hp]
        b_blocks.append(jnp.pad(b_g, (0, Hp - H)))
    wx_fused = jnp.concatenate(wx_blocks, axis=1).astype(jnp.bfloat16)
    wh_fused = jnp.concatenate(wh_blocks, axis=1).astype(jnp.bfloat16)
    b_fused = jnp.concatenate(b_blocks, axis=0)[None, :].astype(jnp.float32)
    return wx_fused, wh_fused, b_fused


# ---------------------------------------------------------------------------
# References
# ---------------------------------------------------------------------------
def lstm_cell_reference(inp, hx, cx, wx_list, wh_list, b_list):
    """Pure-JAX f32 reference matching the PyTorch forward exactly."""
    def gate(g):
        return inp @ wx_list[g].T + b_list[g] + hx @ wh_list[g].T
    i = jax.nn.sigmoid(gate(0))
    f = jax.nn.sigmoid(gate(1))
    g = jnp.tanh(gate(2))
    o = jax.nn.sigmoid(gate(3))
    cy = f * cx + i * g
    hy = o * jnp.tanh(cy)
    return hy, hy, cy


def lstm_cell_reference_bf16(inp, hx, cx, wx_fused, wh_fused, b_fused, H):
    """Reference with the same bf16 matmul operands as the kernels (tight check)."""
    Hp = wx_fused.shape[1] // 4
    hx_p = jnp.pad(hx, ((0, 0), (0, Hp - H)))
    gates = (jnp.dot(inp.astype(jnp.bfloat16), wx_fused,
                     preferred_element_type=jnp.float32)
             + jnp.dot(hx_p.astype(jnp.bfloat16), wh_fused,
                       preferred_element_type=jnp.float32)
             + b_fused)
    i = jax.nn.sigmoid(gates[:, 0 * Hp:0 * Hp + H])
    f = jax.nn.sigmoid(gates[:, 1 * Hp:1 * Hp + H])
    g = jnp.tanh(gates[:, 2 * Hp:2 * Hp + H])
    o = jax.nn.sigmoid(gates[:, 3 * Hp:3 * Hp + H])
    cy = f * cx + i * g
    hy = o * jnp.tanh(cy)
    return hy, cy


# ---------------------------------------------------------------------------
if __name__ == "__main__":
    input_size, hidden_size, batch, seq_len = 16, 32, 8, 6
    key = jax.random.PRNGKey(0)
    k_param, k_x, k_h, k_c, k_seq = jax.random.split(key, 5)

    wx_list, wh_list, b_list = init_lstm_params(k_param, input_size, hidden_size)
    wx_fused, wh_fused, b_fused = pack_lstm_params(wx_list, wh_list, b_list)

    inp = jax.random.normal(k_x, (batch, input_size), jnp.float32)
    hx = jax.random.normal(k_h, (batch, hidden_size), jnp.float32)
    cx = jax.random.normal(k_c, (batch, hidden_size), jnp.float32)

    # ---- single step (the module's forward) ----
    hy, hy2, cy = lstm_cell_pallas(inp, hx, cx, wx_fused, wh_fused, b_fused)
    jax.block_until_ready((hy, hy2, cy))
    assert hy.shape == (batch, hidden_size) and cy.shape == (batch, hidden_size)

    hy_bf, cy_bf = lstm_cell_reference_bf16(inp, hx, cx, wx_fused, wh_fused,
                                            b_fused, hidden_size)
    assert jnp.allclose(hy, hy_bf, atol=5e-3, rtol=5e-3)
    assert jnp.allclose(cy, cy_bf, atol=5e-3, rtol=5e-3)

    hy_ref, _, cy_ref = lstm_cell_reference(inp, hx, cx, wx_list, wh_list, b_list)
    assert jnp.allclose(hy, hy_ref, atol=5e-2, rtol=5e-2)
    assert jnp.allclose(cy, cy_ref, atol=5e-2, rtol=5e-2)

    # ---- sequence regime: time loop inside the kernel, weights resident ----
    x_seq = jax.random.normal(k_seq, (seq_len, batch, input_size), jnp.float32)
    h_seq, hy_T, cy_T = lstm_sequence_pallas(x_seq, hx, cx,
                                             wx_fused, wh_fused, b_fused)
    jax.block_until_ready((h_seq, hy_T, cy_T))
    assert h_seq.shape == (seq_len, batch, hidden_size)

    h_r, c_r = hx, cx
    for t in range(seq_len):
        h_r, c_r = lstm_cell_reference_bf16(x_seq[t], h_r, c_r,
                                            wx_fused, wh_fused, b_fused,
                                            hidden_size)
        assert jnp.allclose(h_seq[t], h_r, atol=1e-2, rtol=1e-2)
    assert jnp.allclose(hy_T, h_r, atol=1e-2, rtol=1e-2)
    assert jnp.allclose(cy_T, c_r, atol=1e-2, rtol=1e-2)

    print("KERNEL_OK")
</pallas_src>

<mosaic_0001>
module attributes {stable_mosaic.version = 11 : i64} {
  func.func @_lstm_step_kernel(%arg0: i32, %arg1: memref<16x16xbf16, #tpu.memory_space<vmem>>, %arg2: memref<16x128xbf16, #tpu.memory_space<vmem>>, %arg3: memref<16x128xf32, #tpu.memory_space<vmem>>, %arg4: memref<16x512xbf16, #tpu.memory_space<vmem>>, %arg5: memref<128x512xbf16, #tpu.memory_space<vmem>>, %arg6: memref<1x512xf32, #tpu.memory_space<vmem>>, %arg7: memref<16x128xf32, #tpu.memory_space<vmem>>, %arg8: memref<16x128xf32, #tpu.memory_space<vmem>>) attributes {dimension_semantics = [#tpu.dimension_semantics<parallel>], iteration_bounds = array<i64: 1>, scalar_prefetch = 0 : i64, scratch_operands = 0 : i64, tpu.core_type = #tpu.core_type<tc>, window_params = [{transform_indices = @transform_0, window_bounds = array<i64: 16, 16>}, {transform_indices = @transform_1, window_bounds = array<i64: 16, 128>}, {transform_indices = @transform_2, window_bounds = array<i64: 16, 128>}, {pipeline_mode = #tpu.pipeline_mode<synchronous>, transform_indices = @transform_3, window_bounds = array<i64: 16, 512>}, {pipeline_mode = #tpu.pipeline_mode<synchronous>, transform_indices = @transform_4, window_bounds = array<i64: 128, 512>}, {pipeline_mode = #tpu.pipeline_mode<synchronous>, transform_indices = @transform_5, window_bounds = array<i64: 1, 512>}, {transform_indices = @transform_6, window_bounds = array<i64: 16, 128>}, {transform_indices = @transform_7, window_bounds = array<i64: 16, 128>}]} {
    %c0 = arith.constant 0 : index
    %c0_0 = arith.constant 0 : index
    %0 = vector.load %arg1[%c0, %c0_0] : memref<16x16xbf16, #tpu.memory_space<vmem>>, vector<16x16xbf16>
    %c0_1 = arith.constant 0 : index
    %c0_2 = arith.constant 0 : index
    %1 = vector.load %arg4[%c0_1, %c0_2] : memref<16x512xbf16, #tpu.memory_space<vmem>>, vector<16x512xbf16>
    %cst = arith.constant dense<0.000000e+00> : vector<16x512xf32>
    %2 = tpu.matmul %0, %1, %cst {dimension_numbers = #tpu.dot_dimension_numbers<[1], [0], [0], [1], [0, 0, 1, 1], [], []>} : vector<16x16xbf16>, vector<16x512xbf16>, vector<16x512xf32> -> vector<16x512xf32>
    %c0_3 = arith.constant 0 : index
    %c0_4 = arith.constant 0 : index
    %3 = vector.load %arg2[%c0_3, %c0_4] : memref<16x128xbf16, #tpu.memory_space<vmem>>, vector<16x128xbf16>
    %c0_5 = arith.constant 0 : index
    %c0_6 = arith.constant 0 : index
    %4 = vector.load %arg5[%c0_5, %c0_6] : memref<128x512xbf16, #tpu.memory_space<vmem>>, vector<128x512xbf16>
    %cst_7 = arith.constant dense<0.000000e+00> : vector<16x512xf32>
    %5 = tpu.matmul %3, %4, %cst_7 {dimension_numbers = #tpu.dot_dimension_numbers<[1], [0], [0], [1], [0, 0, 1, 1], [], []>} : vector<16x128xbf16>, vector<128x512xbf16>, vector<16x512xf32> -> vector<16x512xf32>
    %6 = arith.addf %2, %5 : vector<16x512xf32>
    %c0_8 = arith.constant 0 : index
    %c0_9 = arith.constant 0 : index
    %7 = vector.load %arg6[%c0_8, %c0_9] : memref<1x512xf32, #tpu.memory_space<vmem>>, vector<1x512xf32>
    %8 = vector.broadcast %7 : vector<1x512xf32> to vector<16x512xf32>
    %9 = arith.addf %6, %8 : vector<16x512xf32>
    %c0_10 = arith.constant 0 : index
    %c0_11 = arith.constant 0 : index
    %10 = vector.load %arg3[%c0_10, %c0_11] : memref<16x128xf32, #tpu.memory_space<vmem>>, vector<16x128xf32>
    %11 = vector.extract_strided_slice %9 {offsets = [0, 0], sizes = [16, 128], strides = [1, 1]} : vector<16x512xf32> to vector<16x128xf32>
    %12 = vector.extract_strided_slice %9 {offsets = [0, 128], sizes = [16, 128], strides = [1, 1]} : vector<16x512xf32> to vector<16x128xf32>
    %13 = vector.extract_strided_slice %9 {offsets = [0, 256], sizes = [16, 128], strides = [1, 1]} : vector<16x512xf32> to vector<16x128xf32>
    %14 = vector.extract_strided_slice %9 {offsets = [0, 384], sizes = [16, 128], strides = [1, 1]} : vector<16x512xf32> to vector<16x128xf32>
    %cst_12 = arith.constant 5.000000e-01 : f32
    %15 = vector.broadcast %cst_12 : f32 to vector<16x128xf32>
    %16 = arith.mulf %15, %11 : vector<16x128xf32>
    %17 = math.tanh %16 : vector<16x128xf32>
    %cst_13 = arith.constant 5.000000e-01 : f32
    %18 = vector.broadcast %cst_13 : f32 to vector<16x128xf32>
    %19 = arith.mulf %18, %17 : vector<16x128xf32>
    %cst_14 = arith.constant 5.000000e-01 : f32
    %20 = vector.broadcast %cst_14 : f32 to vector<16x128xf32>
    %21 = arith.addf %19, %20 : vector<16x128xf32>
    %cst_15 = arith.constant 5.000000e-01 : f32
    %22 = vector.broadcast %cst_15 : f32 to vector<16x128xf32>
    %23 = arith.mulf %22, %12 : vector<16x128xf32>
    %24 = math.tanh %23 : vector<16x128xf32>
    %cst_16 = arith.constant 5.000000e-01 : f32
    %25 = vector.broadcast %cst_16 : f32 to vector<16x128xf32>
    %26 = arith.mulf %25, %24 : vector<16x128xf32>
    %cst_17 = arith.constant 5.000000e-01 : f32
    %27 = vector.broadcast %cst_17 : f32 to vector<16x128xf32>
    %28 = arith.addf %26, %27 : vector<16x128xf32>
    %cst_18 = arith.constant 5.000000e-01 : f32
    %29 = vector.broadcast %cst_18 : f32 to vector<16x128xf32>
    %30 = arith.mulf %29, %14 : vector<16x128xf32>
    %31 = math.tanh %30 : vector<16x128xf32>
    %cst_19 = arith.constant 5.000000e-01 : f32
    %32 = vector.broadcast %cst_19 : f32 to vector<16x128xf32>
    %33 = arith.mulf %32, %31 : vector<16x128xf32>
    %cst_20 = arith.constant 5.000000e-01 : f32
    %34 = vector.broadcast %cst_20 : f32 to vector<16x128xf32>
    %35 = arith.addf %33, %34 : vector<16x128xf32>
    %36 = math.tanh %13 : vector<16x128xf32>
    %37 = arith.mulf %28, %10 : vector<16x128xf32>
    %38 = arith.mulf %21, %36 : vector<16x128xf32>
    %39 = arith.addf %37, %38 : vector<16x128xf32>
    %40 = math.tanh %39 : vector<16x128xf32>
    %41 = arith.mulf %35, %40 : vector<16x128xf32>
    %c0_21 = arith.constant 0 : index
    %c0_22 = arith.constant 0 : index
    %42 = vector.load %arg7[%c0_21, %c0_22] : memref<16x128xf32, #tpu.memory_space<vmem>>, vector<16x128xf32>
    tpu.vector_store %arg7[%c0_21, %c0_22], %41 {strides = array<i32>} : memref<16x128xf32, #tpu.memory_space<vmem>>, vector<16x128xf32>,
    %c0_23 = arith.constant 0 : index
    %c0_24 = arith.constant 0 : index
    %43 = vector.load %arg8[%c0_23, %c0_24] : memref<16x128xf32, #tpu.memory_space<vmem>>, vector<16x128xf32>
    tpu.vector_store %arg8[%c0_23, %c0_24], %39 {strides = array<i32>} : memref<16x128xf32, #tpu.memory_space<vmem>>, vector<16x128xf32>,
    return
  }
  func.func @transform_0(%arg0: i32) -> (i32, i32) {
    %c0_i32 = arith.constant 0 : i32
    %c0_i32_0 = arith.constant 0 : i32
    return %arg0, %c0_i32 : i32, i32
  }
  func.func @transform_1(%arg0: i32) -> (i32, i32) {
    %c0_i32 = arith.constant 0 : i32
    %c0_i32_0 = arith.constant 0 : i32
    return %arg0, %c0_i32 : i32, i32
  }
  func.func @transform_2(%arg0: i32) -> (i32, i32) {
    %c0_i32 = arith.constant 0 : i32
    %c0_i32_0 = arith.constant 0 : i32
    return %arg0, %c0_i32 : i32, i32
  }
  func.func @transform_3(%arg0: i32) -> (i32, i32) {
    %c0_i32 = arith.constant 0 : i32
    %c0_i32_0 = arith.constant 0 : i32
    %c0_i32_1 = arith.constant 0 : i32
    return %c0_i32, %c0_i32_0 : i32, i32
  }
  func.func @transform_4(%arg0: i32) -> (i32, i32) {
    %c0_i32 = arith.constant 0 : i32
    %c0_i32_0 = arith.constant 0 : i32
    %c0_i32_1 = arith.constant 0 : i32
    return %c0_i32, %c0_i32_0 : i32, i32
  }
  func.func @transform_5(%arg0: i32) -> (i32, i32) {
    %c0_i32 = arith.constant 0 : i32
    %c0_i32_0 = arith.constant 0 : i32
    %c0_i32_1 = arith.constant 0 : i32
    return %c0_i32, %c0_i32_0 : i32, i32
  }
  func.func @transform_6(%arg0: i32) -> (i32, i32) {
    %c0_i32 = arith.constant 0 : i32
    %c0_i32_0 = arith.constant 0 : i32
    return %arg0, %c0_i32 : i32, i32
  }
  func.func @transform_7(%arg0: i32) -> (i32, i32) {
    %c0_i32 = arith.constant 0 : i32
    %c0_i32_0 = arith.constant 0 : i32
    return %arg0, %c0_i32 : i32, i32
  }
}

module attributes {stable_mosaic.version = 11 : i64} {
  func.func @_lstm_step_kernel(%arg0: i32, %arg1: memref<16x16xbf16, #tpu.memory_space<vmem>>, %arg2: memref<16x128xbf16, #tpu.memory_space<vmem>>, %arg3: memref<16x128xf32, #tpu.memory_space<vmem>>, %arg4: memref<16x512xbf16, #tpu.memory_space<vmem>>, %arg5: memref<128x512xbf16, #tpu.memory_space<vmem>>, %arg6: memref<1x512xf32, #tpu.memory_space<vmem>>, %arg7: memref<16x128xf32, #tpu.memory_space<vmem>>, %arg8: memref<16x128xf32, #tpu.memory_space<vmem>>) attributes {dimension_semantics = [#tpu.dimension_semantics<parallel>], iteration_bounds = array<i64: 1>, scalar_prefetch = 0 : i64, scratch_operands = 0 : i64, tpu.core_type = #tpu.core_type<tc>, window_params = [{transform_indices = @transform_0, window_bounds = array<i64: 16, 16>}, {transform_indices = @transform_1, window_bounds = array<i64: 16, 128>}, {transform_indices = @transform_2, window_bounds = array<i64: 16, 128>}, {pipeline_mode = #tpu.pipeline_mode<synchronous>, transform_indices = @transform_3, window_bounds = array<i64: 16, 512>}, {pipeline_mode = #tpu.pipeline_mode<synchronous>, transform_indices = @transform_4, window_bounds = array<i64: 128, 512>}, {pipeline_mode = #tpu.pipeline_mode<synchronous>, transform_indices = @transform_5, window_bounds = array<i64: 1, 512>}, {transform_indices = @transform_6, window_bounds = array<i64: 16, 128>}, {transform_indices = @transform_7, window_bounds = array<i64: 16, 128>}]} {
    %c0 = arith.constant 0 : index
    %c0_0 = arith.constant 0 : index
    %0 = vector.load %arg1[%c0, %c0_0] : memref<16x16xbf16, #tpu.memory_space<vmem>>, vector<16x16xbf16>
    %c0_1 = arith.constant 0 : index
    %c0_2 = arith.constant 0 : index
    %1 = vector.load %arg4[%c0_1, %c0_2] : memref<16x512xbf16, #tpu.memory_space<vmem>>, vector<16x512xbf16>
    %cst = arith.constant dense<0.000000e+00> : vector<16x512xf32>
    %2 = tpu.matmul %0, %1, %cst {dimension_numbers = #tpu.dot_dimension_numbers<[1], [0], [0], [1], [0, 0, 1, 1], [], []>} : vector<16x16xbf16>, vector<16x512xbf16>, vector<16x512xf32> -> vector<16x512xf32>
    %c0_3 = arith.constant 0 : index
    %c0_4 = arith.constant 0 : index
    %3 = vector.load %arg2[%c0_3, %c0_4] : memref<16x128xbf16, #tpu.memory_space<vmem>>, vector<16x128xbf16>
    %c0_5 = arith.constant 0 : index
    %c0_6 = arith.constant 0 : index
    %4 = vector.load %arg5[%c0_5, %c0_6] : memref<128x512xbf16, #tpu.memory_space<vmem>>, vector<128x512xbf16>
    %cst_7 = arith.constant dense<0.000000e+00> : vector<16x512xf32>
    %5 = tpu.matmul %3, %4, %cst_7 {dimension_numbers = #tpu.dot_dimension_numbers<[1], [0], [0], [1], [0, 0, 1, 1], [], []>} : vector<16x128xbf16>, vector<128x512xbf16>, vector<16x512xf32> -> vector<16x512xf32>
    %6 = arith.addf %2, %5 : vector<16x512xf32>
    %c0_8 = arith.constant 0 : index
    %c0_9 = arith.constant 0 : index
    %7 = vector.load %arg6[%c0_8, %c0_9] : memref<1x512xf32, #tpu.memory_space<vmem>>, vector<1x512xf32>
    %8 = vector.broadcast %7 : vector<1x512xf32> to vector<16x512xf32>
    %9 = arith.addf %6, %8 : vector<16x512xf32>
    %c0_10 = arith.constant 0 : index
    %c0_11 = arith.constant 0 : index
    %10 = vector.load %arg3[%c0_10, %c0_11] : memref<16x128xf32, #tpu.memory_space<vmem>>, vector<16x128xf32>
    %11 = vector.extract_strided_slice %9 {offsets = [0, 0], sizes = [16, 128], strides = [1, 1]} : vector<16x512xf32> to vector<16x128xf32>
    %12 = vector.extract_strided_slice %9 {offsets = [0, 128], sizes = [16, 128], strides = [1, 1]} : vector<16x512xf32> to vector<16x128xf32>
    %13 = vector.extract_strided_slice %9 {offsets = [0, 256], sizes = [16, 128], strides = [1, 1]} : vector<16x512xf32> to vector<16x128xf32>
    %14 = vector.extract_strided_slice %9 {offsets = [0, 384], sizes = [16, 128], strides = [1, 1]} : vector<16x512xf32> to vector<16x128xf32>
    %cst_12 = arith.constant 5.000000e-01 : f32
    %15 = vector.broadcast %cst_12 : f32 to vector<16x128xf32>
    %16 = arith.mulf %15, %11 : vector<16x128xf32>
    %17 = math.tanh %16 : vector<16x128xf32>
    %cst_13 = arith.constant 5.000000e-01 : f32
    %18 = vector.broadcast %cst_13 : f32 to vector<16x128xf32>
    %19 = arith.mulf %18, %17 : vector<16x128xf32>
    %cst_14 = arith.constant 5.000000e-01 : f32
    %20 = vector.broadcast %cst_14 : f32 to vector<16x128xf32>
    %21 = arith.addf %19, %20 : vector<16x128xf32>
    %cst_15 = arith.constant 5.000000e-01 : f32
    %22 = vector.broadcast %cst_15 : f32 to vector<16x128xf32>
    %23 = arith.mulf %22, %12 : vector<16x128xf32>
    %24 = math.tanh %23 : vector<16x128xf32>
    %cst_16 = arith.constant 5.000000e-01 : f32
    %25 = vector.broadcast %cst_16 : f32 to vector<16x128xf32>
    %26 = arith.mulf %25, %24 : vector<16x128xf32>
    %cst_17 = arith.constant 5.000000e-01 : f32
    %27 = vector.broadcast %cst_17 : f32 to vector<16x128xf32>
    %28 = arith.addf %26, %27 : vector<16x128xf32>
    %cst_18 = arith.constant 5.000000e-01 : f32
    %29 = vector.broadcast %cst_18 : f32 to vector<16x128xf32>
    %30 = arith.mulf %29, %14 : vector<16x128xf32>
    %31 = math.tanh %30 : vector<16x128xf32>
    %cst_19 = arith.constant 5.000000e-01 : f32
    %32 = vector.broadcast %cst_19 : f32 to vector<16x128xf32>
    %33 = arith.mulf %32, %31 : vector<16x128xf32>
    %cst_20 = arith.constant 5.000000e-01 : f32
    %34 = vector.broadcast %cst_20 : f32 to vector<16x128xf32>
    %35 = arith.addf %33, %34 : vector<16x128xf32>
    %36 = math.tanh %13 : vector<16x128xf32>
    %37 = arith.mulf %28, %10 : vector<16x128xf32>
    %38 = arith.mulf %21, %36 : vector<16x128xf32>
    %39 = arith.addf %37, %38 : vector<16x128xf32>
    %40 = math.tanh %39 : vector<16x128xf32>
    %41 = arith.mulf %35, %40 : vector<16x128xf32>
    %c0_21 = arith.constant 0 : index
    %c0_22 = arith.constant 0 : index
    %42 = vector.load %arg7[%c0_21, %c0_22] : memref<16x128xf32, #tpu.memory_space<vmem>>, vector<16x128xf32>
    tpu.vector_store %arg7[%c0_21, %c0_22], %41 {strides = array<i32>} : memref<16x128xf32, #tpu.memory_space<vmem>>, vector<16x128xf32>,
    %c0_23 = arith.constant 0 : index
    %c0_24 = arith.constant 0 : index
    %43 = vector.load %arg8[%c0_23, %c0_24] : memref<16x128xf32, #tpu.memory_space<vmem>>, vector<16x128xf32>
    tpu.vector_store %arg8[%c0_23, %c0_24], %39 {strides = array<i32>} : memref<16x128xf32, #tpu.memory_space<vmem>>, vector<16x128xf32>,
    return
  }
  func.func @transform_0(%arg0: i32) -> (i32, i32) {
    %c0_i32 = arith.constant 0 : i32
    %c0_i32_0 = arith.constant 0 : i32
    return %arg0, %c0_i32 : i32, i32
  }
  func.func @transform_1(%arg0: i32) -> (i32, i32) {
    %c0_i32 = arith.constant 0 : i32
    %c0_i32_0 = arith.constant 0 : i32
    return %arg0, %c0_i32 : i32, i32
  }
  func.func @transform_2(%arg0: i32) -> (i32, i32) {
    %c0_i32 = arith.constant 0 : i32
    %c0_i32_0 = arith.constant 0 : i32
    return %arg0, %c0_i32 : i32, i32
  }
  func.func @transform_3(%arg0: i32) -> (i32, i32) {
    %c0_i32 = arith.constant 0 : i32
    %c0_i32_0 = arith.constant 0 : i32
    %c0_i32_1 = arith.constant 0 : i32
    return %c0_i32, %c0_i32_0 : i32, i32
  }
  func.func @transform_4(%arg0: i32) -> (i32, i32) {
    %c0_i32 = arith.constant 0 : i32
    %c0_i32_0 = arith.constant 0 : i32
    %c0_i32_1 = arith.constant 0 : i32
    return %c0_i32, %c0_i32_0 : i32, i32
  }
  func.func @transform_5(%arg0: i32) -> (i32, i32) {
    %c0_i32 = arith.constant 0 : i32
    %c0_i32_0 = arith.constant 0 : i32
    %c0_i32_1 = arith.constant 0 : i32
    return %c0_i32, %c0_i32_0 : i32, i32
  }
  func.func @transform_6(%arg0: i32) -> (i32, i32) {
    %c0_i32 = arith.constant 0 : i32
    %c0_i32_0 = arith.constant 0 : i32
    return %arg0, %c0_i32 : i32, i32
  }
  func.func @transform_7(%arg0: i32) -> (i32, i32) {
    %c0_i32 = arith.constant 0 : i32
    %c0_i32_0 = arith.constant 0 : i32
    return %arg0, %c0_i32 : i32, i32
  }
}

</mosaic_0001>

<llo_original>
// kernel: tpu_custom_call.1
$region0: #{tpu_custom_call.1}
  #allocation0 [shape = 'u32[]', space=smem, size = 0x4, offset = 0x4, fixed_abs, tag = 'smem constant byte address 0x4 - core index']
  #allocation1 [shape = 'u32[144,128]{1,0:T(1,128)}', space=vmem, size = 0x12000, scoped, tag = 'internal scratch']
  %s0 = inlined_call_operand.hbm [shape: bf16[16,16], index: 0, kind: input, shape index: {}]
  %s1 = inlined_call_operand.hbm [shape: bf16[16,128], index: 1, kind: input, shape index: {}]
  %s2 = inlined_call_operand.hbm [shape: f32[16,128], index: 2, kind: input, shape index: {}]
  %s3 = inlined_call_operand.hbm [shape: bf16[16,512], index: 3, kind: input, shape index: {}]
  %s4 = inlined_call_operand.hbm [shape: bf16[128,512], index: 4, kind: input, shape index: {}]
  %s5 = inlined_call_operand.vmem [shape: f32[1,512], index: 5, kind: input, shape index: {}]
  %s6 = inlined_call_operand.hbm [shape: f32[16,128], index: 6, kind: output, shape index: {0}]
  %s7 = inlined_call_operand.hbm [shape: f32[16,128], index: 7, kind: output, shape index: {1}]
  %8 = xla_tuple %s6, %s7
  %s9 = sld [smem:[#allocation0]]
  $region62: #{tpu_custom_call.1} parent=0
    _
  %s11 = ssub.s32 1, %s9
  %s12 = scalar_select 0, %s11, %s9
  $region1: #{tpu_custom_call.1} parent=0
    #allocation2 [shape = 'u8[4096]{0}', space=vmem, size = 0x1000, scoped, tag = 'input window, operand 0, single buffered']
    #allocation3 [shape = 's32[1]{0}', space=sflag, size = 0x4, scoped, tag = 'scoped memory for tpu_custom_call.1']
    #allocation4 [shape = 's32[1]{0}', space=sflag, size = 0x4, scoped, tag = 'scoped memory for tpu_custom_call.1']
    #allocation5 [shape = 'u8[4096]{0}', space=vmem, size = 0x1000, scoped, tag = 'input window, operand 1, single buffered']
    #allocation6 [shape = 's32[1]{0}', space=sflag, size = 0x4, scoped, tag = 'scoped memory for tpu_custom_call.1']
    #allocation7 [shape = 'u8[8192]{0}', space=vmem, size = 0x2000, scoped, tag = 'input window, operand 2, single buffered']
    #allocation8 [shape = 'u8[16384]{0}', space=vmem, size = 0x4000, scoped, tag = 'input window, operand 3, single buffered']
    #allocation9 [shape = 's32[1]{0}', space=sflag, size = 0x4, scoped, tag = 'scoped memory for tpu_custom_call.1']
    #allocation10 [shape = 'u8[131072]{0}', space=vmem, size = 0x20000, scoped, tag = 'input window, operand 4, single buffered']
    #allocation11 [shape = 'u8[8192]{0}', space=vmem, size = 0x2000, scoped, tag = 'output window, operand 0, single buffered']
    #allocation12 [shape = 'u8[8192]{0}', space=vmem, size = 0x2000, scoped, tag = 'output window, operand 1, single buffered']
    #allocation13 [shape = 's32[1]{0}', space=sflag, size = 0x4, scoped, tag = 'scoped memory for tpu_custom_call.1']
    %13 = vsyncpa [#allocation3], 0
    %14 = vsyncpa [#allocation6], 0
    %15 = vsyncpa [#allocation9], 0
    %16 = vsyncpa [#allocation4], 0
    %17 = vsyncpa [#allocation13], 0
    // Predicated region
    $region2: #{tpu_custom_call.1} parent=1 // pred_check
      _
    $region3: #{tpu_custom_call.1} parent=1 // pred_check_branch
      %19 = sbr.rel (0) target = $region5
    $region4: #{tpu_custom_call.1} parent=1 // pred_region
      %s21 = ssub.s32 128, 128
      %22 = vsyncadd [#allocation3], %s21
      %s23 = sshll.u32 [#allocation2], 4
      %s24 = int_to_ptr.vmem [resolvable:$true] %s23
      %29 = dma.hbm_to_vmem [thread:$0]  %s0, 128, %s24, [#allocation3], 64, 64, 4
    $region5: #{tpu_custom_call.1} parent=1 // pred_fallthru
      _
    // Predicated region
    $region6: #{tpu_custom_call.1} parent=1 // pred_check
      _
    $region7: #{tpu_custom_call.1} parent=1 // pred_check_branch
      %31 = sbr.rel (0) target = $region9
    $region8: #{tpu_custom_call.1} parent=1 // pred_region
      %s33 = ssub.s32 128, 128
      %34 = vsyncadd [#allocation6], %s33
      %s35 = sshll.u32 [#allocation5], 4
      %s36 = int_to_ptr.vmem [resolvable:$true] %s35
      %41 = dma.hbm_to_vmem [thread:$0]  %s1, 128, %s36, [#allocation6], 64, 64, 4
    $region9: #{tpu_custom_call.1} parent=1 // pred_fallthru
      _
    // Predicated region
    $region10: #{tpu_custom_call.1} parent=1 // pred_check
      _
    $region11: #{tpu_custom_call.1} parent=1 // pred_check_branch
      %43 = sbr.rel (0) target = $region13
    $region12: #{tpu_custom_call.1} parent=1 // pred_region
      %s45 = ssub.s32 256, 256
      %46 = vsyncadd [#allocation6], %s45
      %s47 = sshll.u32 [#allocation7], 4
      %s48 = int_to_ptr.vmem [resolvable:$true] %s47
      %53 = dma.hbm_to_vmem [thread:$0]  %s2, 256, %s48, [#allocation6], 128, 128, 8
    $region13: #{tpu_custom_call.1} parent=1 // pred_fallthru
      _
    // Predicated region
    $region14: #{tpu_custom_call.1} parent=1 // pred_check
      _
    $region15: #{tpu_custom_call.1} parent=1 // pred_check_branch
      %55 = sbr.rel (0) target = $region17
    $region16: #{tpu_custom_call.1} parent=1 // pred_region
      %s57 = ssub.s32 512, 512
      %58 = vsyncadd [#allocation9], %s57
      %s59 = sshll.u32 [#allocation8], 4
      %s60 = int_to_ptr.vmem [resolvable:$true] %s59
      %65 = dma.hbm_to_vmem [thread:$0]  %s3, 512, %s60, [#allocation9], 256, 256, 16
    $region17: #{tpu_custom_call.1} parent=1 // pred_fallthru
      _
    // Predicated region
    $region18: #{tpu_custom_call.1} parent=1 // pred_check
      _
    $region19: #{tpu_custom_call.1} parent=1 // pred_check_branch
      %67 = sbr.rel (0) target = $region21
    $region20: #{tpu_custom_call.1} parent=1 // pred_region
      %s69 = ssub.s32 4096, 4096
      %70 = vsyncadd [#allocation9], %s69
      %s71 = sshll.u32 [#allocation10], 4
      %s72 = int_to_ptr.vmem [resolvable:$true] %s71
      %77 = dma.hbm_to_vmem [thread:$0]  %s4, 4096, %s72, [#allocation9], 256, 256, 16
    $region21: #{tpu_custom_call.1} parent=1 // pred_fallthru
      _
    // Predicated region
    $region22: #{tpu_custom_call.1} parent=1 // pred_check
      _
    $region23: #{tpu_custom_call.1} parent=1 // pred_check_branch
      %79 = sbr.rel (0) target = $region25
    $region24: #{tpu_custom_call.1} parent=1 // pred_region
      _
    $region25: #{tpu_custom_call.1} parent=1 // pred_fallthru
      _
    // Predicated region
    $region26: #{tpu_custom_call.1} parent=1 // pred_check
      _
    $region27: #{tpu_custom_call.1} parent=1 // pred_check_branch
      %81 = sbr.rel (0) target = $region29
    $region28: #{tpu_custom_call.1} parent=1 // pred_region
      %82 = dma.done [#allocation3], 128
    $region29: #{tpu_custom_call.1} parent=1 // pred_fallthru
      _
    // Predicated region
    $region30: #{tpu_custom_call.1} parent=1 // pred_check
      _
    $region31: #{tpu_custom_call.1} parent=1 // pred_check_branch
      %84 = sbr.rel (0) target = $region33
    $region32: #{tpu_custom_call.1} parent=1 // pred_region
      %85 = dma.done [#allocation6], 128
    $region33: #{tpu_custom_call.1} parent=1 // pred_fallthru
      _
    // Predicated region
    $region34: #{tpu_custom_call.1} parent=1 // pred_check
      _
    $region35: #{tpu_custom_call.1} parent=1 // pred_check_branch
      %87 = sbr.rel (0) target = $region37
    $region36: #{tpu_custom_call.1} parent=1 // pred_region
      %88 = dma.done [#allocation6], 256
    $region37: #{tpu_custom_call.1} parent=1 // pred_fallthru
      _
    // Predicated region
    $region38: #{tpu_custom_call.1} parent=1 // pred_check
      _
    $region39: #{tpu_custom_call.1} parent=1 // pred_check_branch
      %90 = sbr.rel (0) target = $region41
    $region40: #{tpu_custom_call.1} parent=1 // pred_region
      %91 = dma.done [#allocation9], 512
    $region41: #{tpu_custom_call.1} parent=1 // pred_fallthru
      _
    // Predicated region
    $region42: #{tpu_custom_call.1} parent=1 // pred_check
      _
    $region43: #{tpu_custom_call.1} parent=1 // pred_check_branch
      %93 = sbr.rel (0) target = $region45
    $region44: #{tpu_custom_call.1} parent=1 // pred_region
      %94 = dma.done [#allocation9], 4096
    $region45: #{tpu_custom_call.1} parent=1 // pred_fallthru
      _
    %v96 = vld [vmem:[#allocation2] sm:$0xf]
    %v97 = vld [vmem:[#allocation2 + $0x4] sm:$0xf]
    %v98 = vld [vmem:[#allocation8] sm:$0xff]
    %v99 = vld [vmem:[#allocation8 + $0x8] sm:$0xff]
    %v100 = vld [vmem:[#allocation8 + $0x10] sm:$0xff]
    %v101 = vld [vmem:[#allocation8 + $0x18] sm:$0xff]
    %v102 = vld [vmem:[#allocation5] sm:$0xf]
    %v103 = vld [vmem:[#allocation5 + $0x4] sm:$0xf]
    %v104 = vld [vmem:[#allocation10] sm:$0xff]
    %v105 = vld [vmem:[#allocation10 + $0x8] sm:$0xff]
    %v106 = vld [vmem:[#allocation10 + $0x10] sm:$0xff]
    %v107 = vld [vmem:[#allocation10 + $0x18] sm:$0xff]
    %v108 = vld [vmem:[#allocation10 + $0x20] sm:$0xff]
    %v109 = vld [vmem:[#allocation10 + $0x28] sm:$0xff]
    %v110 = vld [vmem:[#allocation10 + $0x30] sm:$0xff]
    %v111 = vld [vmem:[#allocation10 + $0x38] sm:$0xff]
    %v112 = vld [vmem:[#allocation10 + $0x40] sm:$0xff]
    %v113 = vld [vmem:[#allocation10 + $0x48] sm:$0xff]
    %v114 = vld [vmem:[#allocation10 + $0x50] sm:$0xff]
    %v115 = vld [vmem:[#allocation10 + $0x58] sm:$0xff]
    %v116 = vld [vmem:[#allocation10 + $0x60] sm:$0xff]
    %v117 = vld [vmem:[#allocation10 + $0x68] sm:$0xff]
    %v118 = vld [vmem:[#allocation10 + $0x70] sm:$0xff]
    %v119 = vld [vmem:[#allocation10 + $0x78] sm:$0xff]
    %v120 = vld [vmem:[#allocation10 + $0x80] sm:$0xff]
    %v121 = vld [vmem:[#allocation10 + $0x88] sm:$0xff]
    %v122 = vld [vmem:[#allocation10 + $0x90] sm:$0xff]
    %v123 = vld [vmem:[#allocation10 + $0x98] sm:$0xff]
    %v124 = vld [vmem:[#allocation10 + $0xa0] sm:$0xff]
    %v125 = vld [vmem:[#allocation10 + $0xa8] sm:$0xff]
    %v126 = vld [vmem:[#allocation10 + $0xb0] sm:$0xff]
    %v127 = vld [vmem:[#allocation10 + $0xb8] sm:$0xff]
    %v128 = vld [vmem:[#allocation10 + $0xc0] sm:$0xff]
    %v129 = vld [vmem:[#allocation10 + $0xc8] sm:$0xff]
    %v130 = vld [vmem:[#allocation10 + $0xd0] sm:$0xff]
    %v131 = vld [vmem:[#allocation10 + $0xd8] sm:$0xff]
    %v132 = vld [vmem:[#allocation10 + $0xe0] sm:$0xff]
    %v133 = vld [vmem:[#allocation10 + $0xe8] sm:$0xff]
    %v134 = vld [vmem:[#allocation10 + $0xf0] sm:$0xff]
    %v135 = vld [vmem:[#allocation10 + $0xf8] sm:$0xff]
    %v138 = vunpack.c.l.b16 %v102
    %v139 = vunpack.c.l.b16 %v103
    %v140 = vpack.c.b16 %v139, %v138
    %v174 = vunpack.c.l.b16 %v104
    %v175 = vunpack.c.h.b16 %v104
    %v176 = vunpack.c.l.b16 %v105
    %v177 = vunpack.c.h.b16 %v105
    %v178 = vunpack.c.l.b16 %v106
    %v179 = vunpack.c.h.b16 %v106
    %v180 = vunpack.c.l.b16 %v107
    %v181 = vunpack.c.h.b16 %v107
    %v182 = vunpack.c.l.b16 %v108
    %v183 = vunpack.c.h.b16 %v108
    %v184 = vunpack.c.l.b16 %v109
    %v185 = vunpack.c.h.b16 %v109
    %v186 = vunpack.c.l.b16 %v110
    %v187 = vunpack.c.h.b16 %v110
    %v188 = vunpack.c.l.b16 %v111
    %v189 = vunpack.c.h.b16 %v111
    %v190 = vunpack.c.l.b16 %v112
    %v191 = vunpack.c.h.b16 %v112
    %v192 = vunpack.c.l.b16 %v113
    %v193 = vunpack.c.h.b16 %v113
    %v194 = vunpack.c.l.b16 %v114
    %v195 = vunpack.c.h.b16 %v114
    %v196 = vunpack.c.l.b16 %v115
    %v197 = vunpack.c.h.b16 %v115
    %v198 = vunpack.c.l.b16 %v116
    %v199 = vunpack.c.h.b16 %v116
    %v200 = vunpack.c.l.b16 %v117
    %v201 = vunpack.c.h.b16 %v117
    %v202 = vunpack.c.l.b16 %v118
    %v203 = vunpack.c.h.b16 %v118
    %v204 = vunpack.c.l.b16 %v119
    %v205 = vunpack.c.h.b16 %v119
    %v206 = vunpack.c.l.b16 %v120
    %v207 = vunpack.c.h.b16 %v120
    %v208 = vunpack.c.l.b16 %v121
    %v209 = vunpack.c.h.b16 %v121
    %v210 = vunpack.c.l.b16 %v122
    %v211 = vunpack.c.h.b16 %v122
    %v212 = vunpack.c.l.b16 %v123
    %v213 = vunpack.c.h.b16 %v123
    %v214 = vunpack.c.l.b16 %v124
    %v215 = vunpack.c.h.b16 %v124
    %v216 = vunpack.c.l.b16 %v125
    %v217 = vunpack.c.h.b16 %v125
    %v218 = vunpack.c.l.b16 %v126
    %v219 = vunpack.c.h.b16 %v126
    %v220 = vunpack.c.l.b16 %v127
    %v221 = vunpack.c.h.b16 %v127
    %v222 = vunpack.c.l.b16 %v128
    %v223 = vunpack.c.h.b16 %v128
    %v224 = vunpack.c.l.b16 %v129
    %v225 = vunpack.c.h.b16 %v129
    %v226 = vunpack.c.l.b16 %v130
    %v227 = vunpack.c.h.b16 %v130
    %v228 = vunpack.c.l.b16 %v131
    %v229 = vunpack.c.h.b16 %v131
    %v230 = vunpack.c.l.b16 %v132
    %v231 = vunpack.c.h.b16 %v132
    %v232 = vunpack.c.l.b16 %v133
    %v233 = vunpack.c.h.b16 %v133
    %v234 = vunpack.c.l.b16 %v134
    %v235 = vunpack.c.h.b16 %v134
    %v236 = vunpack.c.l.b16 %v135
    %v237 = vunpack.c.h.b16 %v135
    %v238 = vpack.c.b16 %v178, %v174
    %v239 = vpack.c.b16 %v179, %v175
    %v240 = vpack.c.b16 %v180, %v176
    %v241 = vpack.c.b16 %v181, %v177
    %v242 = vpack.c.b16 %v186, %v182
    %v243 = vpack.c.b16 %v187, %v183
    %v244 = vpack.c.b16 %v188, %v184
    %v245 = vpack.c.b16 %v189, %v185
    %v246 = vpack.c.b16 %v194, %v190
    %v247 = vpack.c.b16 %v195, %v191
    %v248 = vpack.c.b16 %v196, %v192
    %v249 = vpack.c.b16 %v197, %v193
    %v250 = vpack.c.b16 %v202, %v198
    %v251 = vpack.c.b16 %v203, %v199
    %v252 = vpack.c.b16 %v204, %v200
    %v253 = vpack.c.b16 %v205, %v201
    %v254 = vpack.c.b16 %v210, %v206
    %v255 = vpack.c.b16 %v211, %v207
    %v256 = vpack.c.b16 %v212, %v208
    %v257 = vpack.c.b16 %v213, %v209
    %v258 = vpack.c.b16 %v218, %v214
    %v259 = vpack.c.b16 %v219, %v215
    %v260 = vpack.c.b16 %v220, %v216
    %v261 = vpack.c.b16 %v221, %v217
    %v262 = vpack.c.b16 %v226, %v222
    %v263 = vpack.c.b16 %v227, %v223
    %v264 = vpack.c.b16 %v228, %v224
    %v265 = vpack.c.b16 %v229, %v225
    %v266 = vpack.c.b16 %v234, %v230
    %v267 = vpack.c.b16 %v235, %v231
    %v268 = vpack.c.b16 %v236, %v232
    %v269 = vpack.c.b16 %v237, %v233
    %302 = vmatprep.subr.bf16.mxu0 %v239
    %303 = vmatpush1.bf16.msra.mxu0 %v238
    %304 = vmatprep.subr.bf16.mxu0 %v243
    %305 = vmatpush1.bf16.msra.mxu0 %v242
    %306 = vmatprep.subr.bf16.mxu0 %v247
    %307 = vmatpush1.bf16.msra.mxu0 %v246
    %308 = vmatprep.subr.bf16.mxu0 %v251
    %309 = vmatpush1.bf16.msra.mxu0 %v250
    %310 = vmatprep.subr.bf16.mxu0 %v255
    %311 = vmatpush1.bf16.msra.mxu0 %v254
    %312 = vmatprep.subr.bf16.mxu0 %v259
    %313 = vmatpush1.bf16.msra.mxu0 %v258
    %314 = vmatprep.subr.bf16.mxu0 %v263
    %315 = vmatpush1.bf16.msra.mxu0 %v262
    %316 = vmatprep.subr.bf16.mxu0 %v267
    %317 = vmatpush1.bf16.msra.mxu0 %v266
    %318 = vmatprep.subr.bf16.mxu0 0
    %319 = vmatpush1.bf16.msra.mxu0 0
    %320 = vmatprep.subr.bf16.mxu0 0
    %321 = vmatpush1.bf16.msra.mxu0 0
    %322 = vmatprep.subr.bf16.mxu0 0
    %323 = vmatpush1.bf16.msra.mxu0 0
    %324 = vmatprep.subr.bf16.mxu0 0
    %325 = vmatpush1.bf16.msra.mxu0 0
    %326 = vmatprep.subr.bf16.mxu0 0
    %327 = vmatpush1.bf16.msra.mxu0 0
    %328 = vmatprep.subr.bf16.mxu0 0
    %329 = vmatpush1.bf16.msra.mxu0 0
    %330 = vmatprep.subr.bf16.mxu0 0
    %331 = vmatpush1.bf16.msra.mxu0 0
    %332 = vmatprep.subr.bf16.mxu0 0
    %333 = vmatpush1.bf16.msra.mxu0 0
    %334 = vmatprep.mubr.bf16.mxu0 0
    %335 = vmatmul.mubr.bf16.gmra.mrb[0].mxu0 %v140
    %v336 = vpop.f32.mrb[0].mxu0
    %v337 = vadd.f32 0.0, %v336
    %v338 = vpop.f32.mrb[0].mxu0
    %v339 = vadd.f32 0.0, %v338
    %v340 = vpop.f32.mrb[0].mxu0
    %v341 = vadd.f32 0.0, %v340
    %v342 = vpop.f32.mrb[0].mxu0
    %v343 = vadd.f32 0.0, %v342
    %344 = vdwg.mxu0
    %345 = vmatprep.subr.bf16.mxu0 %v241
    %346 = vmatpush1.bf16.msra.mxu0 %v240
    %347 = vmatprep.subr.bf16.mxu0 %v245
    %348 = vmatpush1.bf16.msra.mxu0 %v244
    %349 = vmatprep.subr.bf16.mxu0 %v249
    %350 = vmatpush1.bf16.msra.mxu0 %v248
    %351 = vmatprep.subr.bf16.mxu0 %v253
    %352 = vmatpush1.bf16.msra.mxu0 %v252
    %353 = vmatprep.subr.bf16.mxu0 %v257
    %354 = vmatpush1.bf16.msra.mxu0 %v256
    %355 = vmatprep.subr.bf16.mxu0 %v261
    %356 = vmatpush1.bf16.msra.mxu0 %v260
    %357 = vmatprep.subr.bf16.mxu0 %v265
    %358 = vmatpush1.bf16.msra.mxu0 %v264
    %359 = vmatprep.subr.bf16.mxu0 %v269
    %360 = vmatpush1.bf16.msra.mxu0 %v268
    %361 = vmatprep.subr.bf16.mxu0 0
    %362 = vmatpush1.bf16.msra.mxu0 0
    %363 = vmatprep.subr.bf16.mxu0 0
    %364 = vmatpush1.bf16.msra.mxu0 0
    %365 = vmatprep.subr.bf16.mxu0 0
    %366 = vmatpush1.bf16.msra.mxu0 0
    %367 = vmatprep.subr.bf16.mxu0 0
    %368 = vmatpush1.bf16.msra.mxu0 0
    %369 = vmatprep.subr.bf16.mxu0 0
    %370 = vmatpush1.bf16.msra.mxu0 0
    %371 = vmatprep.subr.bf16.mxu0 0
    %372 = vmatpush1.bf16.msra.mxu0 0
    %373 = vmatprep.subr.bf16.mxu0 0
    %374 = vmatpush1.bf16.msra.mxu0 0
    %375 = vmatprep.subr.bf16.mxu0 0
    %376 = vmatpush1.bf16.msra.mxu0 0
    %377 = vmatprep.mubr.bf16.mxu0 0
    %378 = vmatmul.mubr.bf16.gmra.mrb[0].mxu0 %v140
    %v379 = vpop.f32.mrb[0].mxu0
    %v380 = vadd.f32 0.0, %v379
    %v381 = vpop.f32.mrb[0].mxu0
    %v382 = vadd.f32 0.0, %v381
    %v383 = vpop.f32.mrb[0].mxu0
    %v384 = vadd.f32 0.0, %v383
    %v385 = vpop.f32.mrb[0].mxu0
    %v386 = vadd.f32 0.0, %v385
    %387 = vdwg.mxu0
    %v390 = vunpack.c.l.b16 %v96
    %v391 = vunpack.c.l.b16 %v97
    %v392 = vpack.c.b16 %v391, %v390
    %v397 = vunpack.c.l.b16 %v98
    %v398 = vunpack.c.h.b16 %v98
    %v399 = vunpack.c.l.b16 %v99
    %v400 = vunpack.c.h.b16 %v99
    %v401 = vunpack.c.l.b16 %v100
    %v402 = vunpack.c.h.b16 %v100
    %v403 = vunpack.c.l.b16 %v101
    %v404 = vunpack.c.h.b16 %v101
    %v405 = vpack.c.b16 %v401, %v397
    %v406 = vpack.c.b16 %v402, %v398
    %v407 = vpack.c.b16 %v403, %v399
    %v408 = vpack.c.b16 %v404, %v400
    %vm413 = vcmask 130048
    %v415 = vsel %vm413, %v392, 0
    %417 = vmatprep.subr.bf16.mxu0 %v406
    %418 = vmatpush1.bf16.msra.mxu0 %v405
    %419 = vmatprep.subr.bf16.mxu0 0
    %420 = vmatpush1.bf16.msra.mxu0 0
    %421 = vmatprep.subr.bf16.mxu0 0
    %422 = vmatpush1.bf16.msra.mxu0 0
    %423 = vmatprep.subr.bf16.mxu0 0
    %424 = vmatpush1.bf16.msra.mxu0 0
    %425 = vmatprep.subr.bf16.mxu0 0
    %426 = vmatpush1.bf16.msra.mxu0 0
    %427 = vmatprep.subr.bf16.mxu0 0
    %428 = vmatpush1.bf16.msra.mxu0 0
    %429 = vmatprep.subr.bf16.mxu0 0
    %430 = vmatpush1.bf16.msra.mxu0 0
    %431 = vmatprep.subr.bf16.mxu0 0
    %432 = vmatpush1.bf16.msra.mxu0 0
    %433 = vmatprep.subr.bf16.mxu0 0
    %434 = vmatpush1.bf16.msra.mxu0 0
    %435 = vmatprep.subr.bf16.mxu0 0
    %436 = vmatpush1.bf16.msra.mxu0 0
    %437 = vmatprep.subr.bf16.mxu0 0
    %438 = vmatpush1.bf16.msra.mxu0 0
    %439 = vmatprep.subr.bf16.mxu0 0
    %440 = vmatpush1.bf16.msra.mxu0 0
    %441 = vmatprep.subr.bf16.mxu0 0
    %442 = vmatpush1.bf16.msra.mxu0 0
    %443 = vmatprep.subr.bf16.mxu0 0
    %444 = vmatpush1.bf16.msra.mxu0 0
    %445 = vmatprep.subr.bf16.mxu0 0
    %446 = vmatpush1.bf16.msra.mxu0 0
    %447 = vmatprep.subr.bf16.mxu0 0
    %448 = vmatpush1.bf16.msra.mxu0 0
    %449 = vmatprep.mubr.bf16.mxu0 0
    %450 = vmatmul.mubr.bf16.gmra.mrb[0].mxu0 %v415
    %v451 = vpop.f32.mrb[0].mxu0
    %v452 = vadd.f32 %v337, %v451
    %v453 = vpop.f32.mrb[0].mxu0
    %v454 = vadd.f32 %v339, %v453
    %v455 = vpop.f32.mrb[0].mxu0
    %v456 = vadd.f32 %v341, %v455
    %v457 = vpop.f32.mrb[0].mxu0
    %v458 = vadd.f32 %v343, %v457
    %459 = vdwg.mxu0
    %460 = vmatprep.subr.bf16.mxu0 %v408
    %461 = vmatpush1.bf16.msra.mxu0 %v407
    %462 = vmatprep.subr.bf16.mxu0 0
    %463 = vmatpush1.bf16.msra.mxu0 0
    %464 = vmatprep.subr.bf16.mxu0 0
    %465 = vmatpush1.bf16.msra.mxu0 0
    %466 = vmatprep.subr.bf16.mxu0 0
    %467 = vmatpush1.bf16.msra.mxu0 0
    %468 = vmatprep.subr.bf16.mxu0 0
    %469 = vmatpush1.bf16.msra.mxu0 0
    %470 = vmatprep.subr.bf16.mxu0 0
    %471 = vmatpush1.bf16.msra.mxu0 0
    %472 = vmatprep.subr.bf16.mxu0 0
    %473 = vmatpush1.bf16.msra.mxu0 0
    %474 = vmatprep.subr.bf16.mxu0 0
    %475 = vmatpush1.bf16.msra.mxu0 0
    %476 = vmatprep.subr.bf16.mxu0 0
    %477 = vmatpush1.bf16.msra.mxu0 0
    %478 = vmatprep.subr.bf16.mxu0 0
    %479 = vmatpush1.bf16.msra.mxu0 0
    %480 = vmatprep.subr.bf16.mxu0 0
    %481 = vmatpush1.bf16.msra.mxu0 0
    %482 = vmatprep.subr.bf16.mxu0 0
    %483 = vmatpush1.bf16.msra.mxu0 0
    %484 = vmatprep.subr.bf16.mxu0 0
    %485 = vmatpush1.bf16.msra.mxu0 0
    %486 = vmatprep.subr.bf16.mxu0 0
    %487 = vmatpush1.bf16.msra.mxu0 0
    %488 = vmatprep.subr.bf16.mxu0 0
    %489 = vmatpush1.bf16.msra.mxu0 0
    %490 = vmatprep.subr.bf16.mxu0 0
    %491 = vmatpush1.bf16.msra.mxu0 0
    %492 = vmatprep.mubr.bf16.mxu0 0
    %493 = vmatmul.mubr.bf16.gmra.mrb[0].mxu0 %v415
    %v494 = vpop.f32.mrb[0].mxu0
    %v495 = vadd.f32 %v380, %v494
    %v496 = vpop.f32.mrb[0].mxu0
    %v497 = vadd.f32 %v382, %v496
    %v498 = vpop.f32.mrb[0].mxu0
    %v499 = vadd.f32 %v384, %v498
    %v500 = vpop.f32.mrb[0].mxu0
    %v501 = vadd.f32 %v386, %v500
    %502 = vdwg.mxu0
    %v503 = vld [vmem:[%s5] sm:$0xf]
    %v505 = vlaneseq
    %v506 = vshrl.u32 %v505, 7
    %v507 = vsub.s32 0, %v506
    %v508 = vrot.slane %v503, %v507
    %v509 = vlaneseq
    %v510 = vshrl.u32 %v509, 7
    %v511 = vsub.s32 1, %v510
    %v512 = vrot.slane %v503, %v511
    %v513 = vlaneseq
    %v514 = vshrl.u32 %v513, 7
    %v515 = vsub.s32 2, %v514
    %v516 = vrot.slane %v503, %v515
    %v517 = vlaneseq
    %v518 = vshrl.u32 %v517, 7
    %v519 = vsub.s32 3, %v518
    %v520 = vrot.slane %v503, %v519
    %v525 = vadd.f32 %v452, %v508
    %v526 = vadd.f32 %v454, %v512
    %v527 = vadd.f32 %v495, %v516
    %v528 = vadd.f32 %v497, %v520
    %v529 = vadd.f32 %v456, %v508
    %v530 = vadd.f32 %v458, %v512
    %v531 = vadd.f32 %v499, %v516
    %v532 = vadd.f32 %v501, %v520
    %v533 = vld [vmem:[#allocation7] sm:$0xff]
    %v534 = vld [vmem:[#allocation7 + $0x8] sm:$0xff]
    %v535 = vmul.f32 %v525, 0.5
    %v536 = vmul.f32 %v529, 0.5
    %v537 = vtanh.pop %v535
    %v538 = vtanh.pop %v536
    %v539 = vmul.f32 %v537, 0.5
    %v540 = vmul.f32 %v538, 0.5
    %v541 = vadd.f32 %v539, 0.5
    %v542 = vadd.f32 %v540, 0.5
    %v543 = vmul.f32 %v526, 0.5
    %v544 = vmul.f32 %v530, 0.5
    %v545 = vtanh.pop %v543
    %v546 = vtanh.pop %v544
    %v547 = vmul.f32 %v545, 0.5
    %v548 = vmul.f32 %v546, 0.5
    %v549 = vadd.f32 %v547, 0.5
    %v550 = vadd.f32 %v548, 0.5
    %v551 = vmul.f32 %v528, 0.5
    %v552 = vmul.f32 %v532, 0.5
    %v553 = vtanh.pop %v551
    %v554 = vtanh.pop %v552
    %v555 = vmul.f32 %v553, 0.5
    %v556 = vmul.f32 %v554, 0.5
    %v557 = vadd.f32 %v555, 0.5
    %v558 = vadd.f32 %v556, 0.5
    %v559 = vtanh.pop %v527
    %v560 = vtanh.pop %v531
    %v561 = vmul.f32 %v549, %v533
    %v562 = vmul.f32 %v550, %v534
    %v563 = vmul.f32 %v541, %v559
    %v564 = vmul.f32 %v542, %v560
    %v565 = vadd.f32 %v561, %v563
    %v566 = vadd.f32 %v562, %v564
    %v567 = vtanh.pop %v565
    %v568 = vtanh.pop %v566
    %v569 = vmul.f32 %v557, %v567
    %v570 = vmul.f32 %v558, %v568
    %571 = vst [vmem:[#allocation11] sm:$0xff] %v569
    %572 = vst [vmem:[#allocation11 + $0x8] sm:$0xff] %v570
    %573 = vst [vmem:[#allocation12] sm:$0xff] %v565
    %574 = vst [vmem:[#allocation12 + $0x8] sm:$0xff] %v566
    // Predicated region
    $region46: #{tpu_custom_call.1} parent=1 // pred_check
      _
    $region47: #{tpu_custom_call.1} parent=1 // pred_check_branch
      %576 = sbr.rel (0) target = $region49
    $region48: #{tpu_custom_call.1} parent=1 // pred_region
      %s578 = ssub.s32 256, 256
      %579 = vsyncadd [#allocation4], %s578
      %s580 = sshll.u32 [#allocation11], 4
      %s581 = int_to_ptr.vmem [resolvable:$true] %s580
      %586 = dma.vmem_to_hbm [thread:$0]  %s581, 256, %s6, [#allocation4], 128, 128, 8
    $region49: #{tpu_custom_call.1} parent=1 // pred_fallthru
      _
    // Predicated region
    $region50: #{tpu_custom_call.1} parent=1 // pred_check
      _
    $region51: #{tpu_custom_call.1} parent=1 // pred_check_branch
      %588 = sbr.rel (0) target = $region53
    $region52: #{tpu_custom_call.1} parent=1 // pred_region
      %s590 = ssub.s32 256, 256
      %591 = vsyncadd [#allocation13], %s590
      %s592 = sshll.u32 [#allocation12], 4
      %s593 = int_to_ptr.vmem [resolvable:$true] %s592
      %598 = dma.vmem_to_hbm [thread:$0]  %s593, 256, %s7, [#allocation13], 128, 128, 8
    $region53: #{tpu_custom_call.1} parent=1 // pred_fallthru
      _
    // Predicated region
    $region54: #{tpu_custom_call.1} parent=1 // pred_check
      _
    $region55: #{tpu_custom_call.1} parent=1 // pred_check_branch
      %600 = sbr.rel (0) target = $region57
    $region56: #{tpu_custom_call.1} parent=1 // pred_region
      %601 = dma.done [#allocation4], 256
    $region57: #{tpu_custom_call.1} parent=1 // pred_fallthru
      _
    // Predicated region
    $region58: #{tpu_custom_call.1} parent=1 // pred_check
      _
    $region59: #{tpu_custom_call.1} parent=1 // pred_check_branch
      %603 = sbr.rel (0) target = $region61
    $region60: #{tpu_custom_call.1} parent=1 // pred_region
      %604 = dma.done [#allocation13], 256
    $region61: #{tpu_custom_call.1} parent=1 // pred_fallthru
      _
    %605 = vsyncpa [#allocation3], 1
    %606 = vsyncpa [#allocation6], 1
    %607 = vsyncpa [#allocation9], 1
    %608 = vsyncpa [#allocation4], 1
    %609 = vsyncpa [#allocation13], 1

// kernel: tpu_custom_call.1
$region0: #{tpu_custom_call.1}
  #allocation0 [shape = 'u32[]', space=smem, size = 0x4, offset = 0x4, fixed_abs, tag = 'smem constant byte address 0x4 - core index']
  #allocation1 [shape = 'u32[144,128]{1,0:T(1,128)}', space=vmem, size = 0x12000, scoped, tag = 'internal scratch']
  %s0 = inlined_call_operand.hbm [shape: bf16[16,16], index: 0, kind: input, shape index: {}]
  %s1 = inlined_call_operand.hbm [shape: bf16[16,128], index: 1, kind: input, shape index: {}]
  %s2 = inlined_call_operand.hbm [shape: f32[16,128], index: 2, kind: input, shape index: {}]
  %s3 = inlined_call_operand.hbm [shape: bf16[16,512], index: 3, kind: input, shape index: {}]
  %s4 = inlined_call_operand.hbm [shape: bf16[128,512], index: 4, kind: input, shape index: {}]
  %s5 = inlined_call_operand.vmem [shape: f32[1,512], index: 5, kind: input, shape index: {}]
  %s6 = inlined_call_operand.hbm [shape: f32[16,128], index: 6, kind: output, shape index: {0}]
  %s7 = inlined_call_operand.hbm [shape: f32[16,128], index: 7, kind: output, shape index: {1}]
  %8 = xla_tuple %s6, %s7
  %s9 = sld [smem:[#allocation0]]
  $region62: #{tpu_custom_call.1} parent=0
    _
  %s11 = ssub.s32 1, %s9
  %s12 = scalar_select 0, %s11, %s9
  $region1: #{tpu_custom_call.1} parent=0
    #allocation2 [shape = 'u8[4096]{0}', space=vmem, size = 0x1000, scoped, tag = 'input window, operand 0, single buffered']
    #allocation3 [shape = 's32[1]{0}', space=sflag, size = 0x4, scoped, tag = 'scoped memory for tpu_custom_call.1']
    #allocation4 [shape = 's32[1]{0}', space=sflag, size = 0x4, scoped, tag = 'scoped memory for tpu_custom_call.1']
    #allocation5 [shape = 'u8[4096]{0}', space=vmem, size = 0x1000, scoped, tag = 'input window, operand 1, single buffered']
    #allocation6 [shape = 's32[1]{0}', space=sflag, size = 0x4, scoped, tag = 'scoped memory for tpu_custom_call.1']
    #allocation7 [shape = 'u8[8192]{0}', space=vmem, size = 0x2000, scoped, tag = 'input window, operand 2, single buffered']
    #allocation8 [shape = 'u8[16384]{0}', space=vmem, size = 0x4000, scoped, tag = 'input window, operand 3, single buffered']
    #allocation9 [shape = 's32[1]{0}', space=sflag, size = 0x4, scoped, tag = 'scoped memory for tpu_custom_call.1']
    #allocation10 [shape = 'u8[131072]{0}', space=vmem, size = 0x20000, scoped, tag = 'input window, operand 4, single buffered']
    #allocation11 [shape = 'u8[8192]{0}', space=vmem, size = 0x2000, scoped, tag = 'output window, operand 0, single buffered']
    #allocation12 [shape = 'u8[8192]{0}', space=vmem, size = 0x2000, scoped, tag = 'output window, operand 1, single buffered']
    #allocation13 [shape = 's32[1]{0}', space=sflag, size = 0x4, scoped, tag = 'scoped memory for tpu_custom_call.1']
    %13 = vsyncpa [#allocation3], 0
    %14 = vsyncpa [#allocation6], 0
    %15 = vsyncpa [#allocation9], 0
    %16 = vsyncpa [#allocation4], 0
    %17 = vsyncpa [#allocation13], 0
    // Predicated region
    $region2: #{tpu_custom_call.1} parent=1 // pred_check
      _
    $region3: #{tpu_custom_call.1} parent=1 // pred_check_branch
      %19 = sbr.rel (0) target = $region5
    $region4: #{tpu_custom_call.1} parent=1 // pred_region
      %s21 = ssub.s32 128, 128
      %22 = vsyncadd [#allocation3], %s21
      %s23 = sshll.u32 [#allocation2], 4
      %s24 = int_to_ptr.vmem [resolvable:$true] %s23
      %29 = dma.hbm_to_vmem [thread:$0]  %s0, 128, %s24, [#allocation3], 64, 64, 4
    $region5: #{tpu_custom_call.1} parent=1 // pred_fallthru
      _
    // Predicated region
    $region6: #{tpu_custom_call.1} parent=1 // pred_check
      _
    $region7: #{tpu_custom_call.1} parent=1 // pred_check_branch
      %31 = sbr.rel (0) target = $region9
    $region8: #{tpu_custom_call.1} parent=1 // pred_region
      %s33 = ssub.s32 128, 128
      %34 = vsyncadd [#allocation6], %s33
      %s35 = sshll.u32 [#allocation5], 4
      %s36 = int_to_ptr.vmem [resolvable:$true] %s35
      %41 = dma.hbm_to_vmem [thread:$0]  %s1, 128, %s36, [#allocation6], 64, 64, 4
    $region9: #{tpu_custom_call.1} parent=1 // pred_fallthru
      _
    // Predicated region
    $region10: #{tpu_custom_call.1} parent=1 // pred_check
      _
    $region11: #{tpu_custom_call.1} parent=1 // pred_check_branch
      %43 = sbr.rel (0) target = $region13
    $region12: #{tpu_custom_call.1} parent=1 // pred_region
      %s45 = ssub.s32 256, 256
      %46 = vsyncadd [#allocation6], %s45
      %s47 = sshll.u32 [#allocation7], 4
      %s48 = int_to_ptr.vmem [resolvable:$true] %s47
      %53 = dma.hbm_to_vmem [thread:$0]  %s2, 256, %s48, [#allocation6], 128, 128, 8
    $region13: #{tpu_custom_call.1} parent=1 // pred_fallthru
      _
    // Predicated region
    $region14: #{tpu_custom_call.1} parent=1 // pred_check
      _
    $region15: #{tpu_custom_call.1} parent=1 // pred_check_branch
      %55 = sbr.rel (0) target = $region17
    $region16: #{tpu_custom_call.1} parent=1 // pred_region
      %s57 = ssub.s32 512, 512
      %58 = vsyncadd [#allocation9], %s57
      %s59 = sshll.u32 [#allocation8], 4
      %s60 = int_to_ptr.vmem [resolvable:$true] %s59
      %65 = dma.hbm_to_vmem [thread:$0]  %s3, 512, %s60, [#allocation9], 256, 256, 16
    $region17: #{tpu_custom_call.1} parent=1 // pred_fallthru
      _
    // Predicated region
    $region18: #{tpu_custom_call.1} parent=1 // pred_check
      _
    $region19: #{tpu_custom_call.1} parent=1 // pred_check_branch
      %67 = sbr.rel (0) target = $region21
    $region20: #{tpu_custom_call.1} parent=1 // pred_region
      %s69 = ssub.s32 4096, 4096
      %70 = vsyncadd [#allocation9], %s69
      %s71 = sshll.u32 [#allocation10], 4
      %s72 = int_to_ptr.vmem [resolvable:$true] %s71
      %77 = dma.hbm_to_vmem [thread:$0]  %s4, 4096, %s72, [#allocation9], 256, 256, 16
    $region21: #{tpu_custom_call.1} parent=1 // pred_fallthru
      _
    // Predicated region
    $region22: #{tpu_custom_call.1} parent=1 // pred_check
      _
    $region23: #{tpu_custom_call.1} parent=1 // pred_check_branch
      %79 = sbr.rel (0) target = $region25
    $region24: #{tpu_custom_call.1} parent=1 // pred_region
      _
    $region25: #{tpu_custom_call.1} parent=1 // pred_fallthru
      _
    // Predicated region
    $region26: #{tpu_custom_call.1} parent=1 // pred_check
      _
    $region27: #{tpu_custom_call.1} parent=1 // pred_check_branch
      %81 = sbr.rel (0) target = $region29
    $region28: #{tpu_custom_call.1} parent=1 // pred_region
      %82 = dma.done [#allocation3], 128
    $region29: #{tpu_custom_call.1} parent=1 // pred_fallthru
      _
    // Predicated region
    $region30: #{tpu_custom_call.1} parent=1 // pred_check
      _
    $region31: #{tpu_custom_call.1} parent=1 // pred_check_branch
      %84 = sbr.rel (0) target = $region33
    $region32: #{tpu_custom_call.1} parent=1 // pred_region
      %85 = dma.done [#allocation6], 128
    $region33: #{tpu_custom_call.1} parent=1 // pred_fallthru
      _
    // Predicated region
    $region34: #{tpu_custom_call.1} parent=1 // pred_check
      _
    $region35: #{tpu_custom_call.1} parent=1 // pred_check_branch
      %87 = sbr.rel (0) target = $region37
    $region36: #{tpu_custom_call.1} parent=1 // pred_region
      %88 = dma.done [#allocation6], 256
    $region37: #{tpu_custom_call.1} parent=1 // pred_fallthru
      _
    // Predicated region
    $region38: #{tpu_custom_call.1} parent=1 // pred_check
      _
    $region39: #{tpu_custom_call.1} parent=1 // pred_check_branch
      %90 = sbr.rel (0) target = $region41
    $region40: #{tpu_custom_call.1} parent=1 // pred_region
      %91 = dma.done [#allocation9], 512
    $region41: #{tpu_custom_call.1} parent=1 // pred_fallthru
      _
    // Predicated region
    $region42: #{tpu_custom_call.1} parent=1 // pred_check
      _
    $region43: #{tpu_custom_call.1} parent=1 // pred_check_branch
      %93 = sbr.rel (0) target = $region45
    $region44: #{tpu_custom_call.1} parent=1 // pred_region
      %94 = dma.done [#allocation9], 4096
    $region45: #{tpu_custom_call.1} parent=1 // pred_fallthru
      _
    %v96 = vld [vmem:[#allocation2] sm:$0xf]
    %v97 = vld [vmem:[#allocation2 + $0x4] sm:$0xf]
    %v98 = vld [vmem:[#allocation8] sm:$0xff]
    %v99 = vld [vmem:[#allocation8 + $0x8] sm:$0xff]
    %v100 = vld [vmem:[#allocation8 + $0x10] sm:$0xff]
    %v101 = vld [vmem:[#allocation8 + $0x18] sm:$0xff]
    %v102 = vld [vmem:[#allocation5] sm:$0xf]
    %v103 = vld [vmem:[#allocation5 + $0x4] sm:$0xf]
    %v104 = vld [vmem:[#allocation10] sm:$0xff]
    %v105 = vld [vmem:[#allocation10 + $0x8] sm:$0xff]
    %v106 = vld [vmem:[#allocation10 + $0x10] sm:$0xff]
    %v107 = vld [vmem:[#allocation10 + $0x18] sm:$0xff]
    %v108 = vld [vmem:[#allocation10 + $0x20] sm:$0xff]
    %v109 = vld [vmem:[#allocation10 + $0x28] sm:$0xff]
    %v110 = vld [vmem:[#allocation10 + $0x30] sm:$0xff]
    %v111 = vld [vmem:[#allocation10 + $0x38] sm:$0xff]
    %v112 = vld [vmem:[#allocation10 + $0x40] sm:$0xff]
    %v113 = vld [vmem:[#allocation10 + $0x48] sm:$0xff]
    %v114 = vld [vmem:[#allocation10 + $0x50] sm:$0xff]
    %v115 = vld [vmem:[#allocation10 + $0x58] sm:$0xff]
    %v116 = vld [vmem:[#allocation10 + $0x60] sm:$0xff]
    %v117 = vld [vmem:[#allocation10 + $0x68] sm:$0xff]
    %v118 = vld [vmem:[#allocation10 + $0x70] sm:$0xff]
    %v119 = vld [vmem:[#allocation10 + $0x78] sm:$0xff]
    %v120 = vld [vmem:[#allocation10 + $0x80] sm:$0xff]
    %v121 = vld [vmem:[#allocation10 + $0x88] sm:$0xff]
    %v122 = vld [vmem:[#allocation10 + $0x90] sm:$0xff]
    %v123 = vld [vmem:[#allocation10 + $0x98] sm:$0xff]
    %v124 = vld [vmem:[#allocation10 + $0xa0] sm:$0xff]
    %v125 = vld [vmem:[#allocation10 + $0xa8] sm:$0xff]
    %v126 = vld [vmem:[#allocation10 + $0xb0] sm:$0xff]
    %v127 = vld [vmem:[#allocation10 + $0xb8] sm:$0xff]
    %v128 = vld [vmem:[#allocation10 + $0xc0] sm:$0xff]
    %v129 = vld [vmem:[#allocation10 + $0xc8] sm:$0xff]
    %v130 = vld [vmem:[#allocation10 + $0xd0] sm:$0xff]
    %v131 = vld [vmem:[#allocation10 + $0xd8] sm:$0xff]
    %v132 = vld [vmem:[#allocation10 + $0xe0] sm:$0xff]
    %v133 = vld [vmem:[#allocation10 + $0xe8] sm:$0xff]
    %v134 = vld [vmem:[#allocation10 + $0xf0] sm:$0xff]
    %v135 = vld [vmem:[#allocation10 + $0xf8] sm:$0xff]
    %v138 = vunpack.c.l.b16 %v102
    %v139 = vunpack.c.l.b16 %v103
    %v140 = vpack.c.b16 %v139, %v138
    %v174 = vunpack.c.l.b16 %v104
    %v175 = vunpack.c.h.b16 %v104
    %v176 = vunpack.c.l.b16 %v105
    %v177 = vunpack.c.h.b16 %v105
    %v178 = vunpack.c.l.b16 %v106
    %v179 = vunpack.c.h.b16 %v106
    %v180 = vunpack.c.l.b16 %v107
    %v181 = vunpack.c.h.b16 %v107
    %v182 = vunpack.c.l.b16 %v108
    %v183 = vunpack.c.h.b16 %v108
    %v184 = vunpack.c.l.b16 %v109
    %v185 = vunpack.c.h.b16 %v109
    %v186 = vunpack.c.l.b16 %v110
    %v187 = vunpack.c.h.b16 %v110
    %v188 = vunpack.c.l.b16 %v111
    %v189 = vunpack.c.h.b16 %v111
    %v190 = vunpack.c.l.b16 %v112
    %v191 = vunpack.c.h.b16 %v112
    %v192 = vunpack.c.l.b16 %v113
    %v193 = vunpack.c.h.b16 %v113
    %v194 = vunpack.c.l.b16 %v114
    %v195 = vunpack.c.h.b16 %v114
    %v196 = vunpack.c.l.b16 %v115
    %v197 = vunpack.c.h.b16 %v115
    %v198 = vunpack.c.l.b16 %v116
    %v199 = vunpack.c.h.b16 %v116
    %v200 = vunpack.c.l.b16 %v117
    %v201 = vunpack.c.h.b16 %v117
    %v202 = vunpack.c.l.b16 %v118
    %v203 = vunpack.c.h.b16 %v118
    %v204 = vunpack.c.l.b16 %v119
    %v205 = vunpack.c.h.b16 %v119
    %v206 = vunpack.c.l.b16 %v120
    %v207 = vunpack.c.h.b16 %v120
    %v208 = vunpack.c.l.b16 %v121
    %v209 = vunpack.c.h.b16 %v121
    %v210 = vunpack.c.l.b16 %v122
    %v211 = vunpack.c.h.b16 %v122
    %v212 = vunpack.c.l.b16 %v123
    %v213 = vunpack.c.h.b16 %v123
    %v214 = vunpack.c.l.b16 %v124
    %v215 = vunpack.c.h.b16 %v124
    %v216 = vunpack.c.l.b16 %v125
    %v217 = vunpack.c.h.b16 %v125
    %v218 = vunpack.c.l.b16 %v126
    %v219 = vunpack.c.h.b16 %v126
    %v220 = vunpack.c.l.b16 %v127
    %v221 = vunpack.c.h.b16 %v127
    %v222 = vunpack.c.l.b16 %v128
    %v223 = vunpack.c.h.b16 %v128
    %v224 = vunpack.c.l.b16 %v129
    %v225 = vunpack.c.h.b16 %v129
    %v226 = vunpack.c.l.b16 %v130
    %v227 = vunpack.c.h.b16 %v130
    %v228 = vunpack.c.l.b16 %v131
    %v229 = vunpack.c.h.b16 %v131
    %v230 = vunpack.c.l.b16 %v132
    %v231 = vunpack.c.h.b16 %v132
    %v232 = vunpack.c.l.b16 %v133
    %v233 = vunpack.c.h.b16 %v133
    %v234 = vunpack.c.l.b16 %v134
    %v235 = vunpack.c.h.b16 %v134
    %v236 = vunpack.c.l.b16 %v135
    %v237 = vunpack.c.h.b16 %v135
    %v238 = vpack.c.b16 %v178, %v174
    %v239 = vpack.c.b16 %v179, %v175
    %v240 = vpack.c.b16 %v180, %v176
    %v241 = vpack.c.b16 %v181, %v177
    %v242 = vpack.c.b16 %v186, %v182
    %v243 = vpack.c.b16 %v187, %v183
    %v244 = vpack.c.b16 %v188, %v184
    %v245 = vpack.c.b16 %v189, %v185
    %v246 = vpack.c.b16 %v194, %v190
    %v247 = vpack.c.b16 %v195, %v191
    %v248 = vpack.c.b16 %v196, %v192
    %v249 = vpack.c.b16 %v197, %v193
    %v250 = vpack.c.b16 %v202, %v198
    %v251 = vpack.c.b16 %v203, %v199
    %v252 = vpack.c.b16 %v204, %v200
    %v253 = vpack.c.b16 %v205, %v201
    %v254 = vpack.c.b16 %v210, %v206
    %v255 = vpack.c.b16 %v211, %v207
    %v256 = vpack.c.b16 %v212, %v208
    %v257 = vpack.c.b16 %v213, %v209
    %v258 = vpack.c.b16 %v218, %v214
    %v259 = vpack.c.b16 %v219, %v215
    %v260 = vpack.c.b16 %v220, %v216
    %v261 = vpack.c.b16 %v221, %v217
    %v262 = vpack.c.b16 %v226, %v222
    %v263 = vpack.c.b16 %v227, %v223
    %v264 = vpack.c.b16 %v228, %v224
    %v265 = vpack.c.b16 %v229, %v225
    %v266 = vpack.c.b16 %v234, %v230
    %v267 = vpack.c.b16 %v235, %v231
    %v268 = vpack.c.b16 %v236, %v232
    %v269 = vpack.c.b16 %v237, %v233
    %302 = vmatprep.subr.bf16.mxu0 %v239
    %303 = vmatpush1.bf16.msra.mxu0 %v238
    %304 = vmatprep.subr.bf16.mxu0 %v243
    %305 = vmatpush1.bf16.msra.mxu0 %v242
    %306 = vmatprep.subr.bf16.mxu0 %v247
    %307 = vmatpush1.bf16.msra.mxu0 %v246
    %308 = vmatprep.subr.bf16.mxu0 %v251
    %309 = vmatpush1.bf16.msra.mxu0 %v250
    %310 = vmatprep.subr.bf16.mxu0 %v255
    %311 = vmatpush1.bf16.msra.mxu0 %v254
    %312 = vmatprep.subr.bf16.mxu0 %v259
    %313 = vmatpush1.bf16.msra.mxu0 %v258
    %314 = vmatprep.subr.bf16.mxu0 %v263
    %315 = vmatpush1.bf16.msra.mxu0 %v262
    %316 = vmatprep.subr.bf16.mxu0 %v267
    %317 = vmatpush1.bf16.msra.mxu0 %v266
    %318 = vmatprep.subr.bf16.mxu0 0
    %319 = vmatpush1.bf16.msra.mxu0 0
    %320 = vmatprep.subr.bf16.mxu0 0
    %321 = vmatpush1.bf16.msra.mxu0 0
    %322 = vmatprep.subr.bf16.mxu0 0
    %323 = vmatpush1.bf16.msra.mxu0 0
    %324 = vmatprep.subr.bf16.mxu0 0
    %325 = vmatpush1.bf16.msra.mxu0 0
    %326 = vmatprep.subr.bf16.mxu0 0
    %327 = vmatpush1.bf16.msra.mxu0 0
    %328 = vmatprep.subr.bf16.mxu0 0
    %329 = vmatpush1.bf16.msra.mxu0 0
    %330 = vmatprep.subr.bf16.mxu0 0
    %331 = vmatpush1.bf16.msra.mxu0 0
    %332 = vmatprep.subr.bf16.mxu0 0
    %333 = vmatpush1.bf16.msra.mxu0 0
    %334 = vmatprep.mubr.bf16.mxu0 0
    %335 = vmatmul.mubr.bf16.gmra.mrb[0].mxu0 %v140
    %v336 = vpop.f32.mrb[0].mxu0
    %v337 = vadd.f32 0.0, %v336
    %v338 = vpop.f32.mrb[0].mxu0
    %v339 = vadd.f32 0.0, %v338
    %v340 = vpop.f32.mrb[0].mxu0
    %v341 = vadd.f32 0.0, %v340
    %v342 = vpop.f32.mrb[0].mxu0
    %v343 = vadd.f32 0.0, %v342
    %344 = vdwg.mxu0
    %345 = vmatprep.subr.bf16.mxu0 %v241
    %346 = vmatpush1.bf16.msra.mxu0 %v240
    %347 = vmatprep.subr.bf16.mxu0 %v245
    %348 = vmatpush1.bf16.msra.mxu0 %v244
    %349 = vmatprep.subr.bf16.mxu0 %v249
    %350 = vmatpush1.bf16.msra.mxu0 %v248
    %351 = vmatprep.subr.bf16.mxu0 %v253
    %352 = vmatpush1.bf16.msra.mxu0 %v252
    %353 = vmatprep.subr.bf16.mxu0 %v257
    %354 = vmatpush1.bf16.msra.mxu0 %v256
    %355 = vmatprep.subr.bf16.mxu0 %v261
    %356 = vmatpush1.bf16.msra.mxu0 %v260
    %357 = vmatprep.subr.bf16.mxu0 %v265
    %358 = vmatpush1.bf16.msra.mxu0 %v264
    %359 = vmatprep.subr.bf16.mxu0 %v269
    %360 = vmatpush1.bf16.msra.mxu0 %v268
    %361 = vmatprep.subr.bf16.mxu0 0
    %362 = vmatpush1.bf16.msra.mxu0 0
    %363 = vmatprep.subr.bf16.mxu0 0
    %364 = vmatpush1.bf16.msra.mxu0 0
    %365 = vmatprep.subr.bf16.mxu0 0
    %366 = vmatpush1.bf16.msra.mxu0 0
    %367 = vmatprep.subr.bf16.mxu0 0
    %368 = vmatpush1.bf16.msra.mxu0 0
    %369 = vmatprep.subr.bf16.mxu0 0
    %370 = vmatpush1.bf16.msra.mxu0 0
    %371 = vmatprep.subr.bf16.mxu0 0
    %372 = vmatpush1.bf16.msra.mxu0 0
    %373 = vmatprep.subr.bf16.mxu0 0
    %374 = vmatpush1.bf16.msra.mxu0 0
    %375 = vmatprep.subr.bf16.mxu0 0
    %376 = vmatpush1.bf16.msra.mxu0 0
    %377 = vmatprep.mubr.bf16.mxu0 0
    %378 = vmatmul.mubr.bf16.gmra.mrb[0].mxu0 %v140
    %v379 = vpop.f32.mrb[0].mxu0
    %v380 = vadd.f32 0.0, %v379
    %v381 = vpop.f32.mrb[0].mxu0
    %v382 = vadd.f32 0.0, %v381
    %v383 = vpop.f32.mrb[0].mxu0
    %v384 = vadd.f32 0.0, %v383
    %v385 = vpop.f32.mrb[0].mxu0
    %v386 = vadd.f32 0.0, %v385
    %387 = vdwg.mxu0
    %v390 = vunpack.c.l.b16 %v96
    %v391 = vunpack.c.l.b16 %v97
    %v392 = vpack.c.b16 %v391, %v390
    %v397 = vunpack.c.l.b16 %v98
    %v398 = vunpack.c.h.b16 %v98
    %v399 = vunpack.c.l.b16 %v99
    %v400 = vunpack.c.h.b16 %v99
    %v401 = vunpack.c.l.b16 %v100
    %v402 = vunpack.c.h.b16 %v100
    %v403 = vunpack.c.l.b16 %v101
    %v404 = vunpack.c.h.b16 %v101
    %v405 = vpack.c.b16 %v401, %v397
    %v406 = vpack.c.b16 %v402, %v398
    %v407 = vpack.c.b16 %v403, %v399
    %v408 = vpack.c.b16 %v404, %v400
    %vm413 = vcmask 130048
    %v415 = vsel %vm413, %v392, 0
    %417 = vmatprep.subr.bf16.mxu0 %v406
    %418 = vmatpush1.bf16.msra.mxu0 %v405
    %419 = vmatprep.subr.bf16.mxu0 0
    %420 = vmatpush1.bf16.msra.mxu0 0
    %421 = vmatprep.subr.bf16.mxu0 0
    %422 = vmatpush1.bf16.msra.mxu0 0
    %423 = vmatprep.subr.bf16.mxu0 0
    %424 = vmatpush1.bf16.msra.mxu0 0
    %425 = vmatprep.subr.bf16.mxu0 0
    %426 = vmatpush1.bf16.msra.mxu0 0
    %427 = vmatprep.subr.bf16.mxu0 0
    %428 = vmatpush1.bf16.msra.mxu0 0
    %429 = vmatprep.subr.bf16.mxu0 0
    %430 = vmatpush1.bf16.msra.mxu0 0
    %431 = vmatprep.subr.bf16.mxu0 0
    %432 = vmatpush1.bf16.msra.mxu0 0
    %433 = vmatprep.subr.bf16.mxu0 0
    %434 = vmatpush1.bf16.msra.mxu0 0
    %435 = vmatprep.subr.bf16.mxu0 0
    %436 = vmatpush1.bf16.msra.mxu0 0
    %437 = vmatprep.subr.bf16.mxu0 0
    %438 = vmatpush1.bf16.msra.mxu0 0
    %439 = vmatprep.subr.bf16.mxu0 0
    %440 = vmatpush1.bf16.msra.mxu0 0
    %441 = vmatprep.subr.bf16.mxu0 0
    %442 = vmatpush1.bf16.msra.mxu0 0
    %443 = vmatprep.subr.bf16.mxu0 0
    %444 = vmatpush1.bf16.msra.mxu0 0
    %445 = vmatprep.subr.bf16.mxu0 0
    %446 = vmatpush1.bf16.msra.mxu0 0
    %447 = vmatprep.subr.bf16.mxu0 0
    %448 = vmatpush1.bf16.msra.mxu0 0
    %449 = vmatprep.mubr.bf16.mxu0 0
    %450 = vmatmul.mubr.bf16.gmra.mrb[0].mxu0 %v415
    %v451 = vpop.f32.mrb[0].mxu0
    %v452 = vadd.f32 %v337, %v451
    %v453 = vpop.f32.mrb[0].mxu0
    %v454 = vadd.f32 %v339, %v453
    %v455 = vpop.f32.mrb[0].mxu0
    %v456 = vadd.f32 %v341, %v455
    %v457 = vpop.f32.mrb[0].mxu0
    %v458 = vadd.f32 %v343, %v457
    %459 = vdwg.mxu0
    %460 = vmatprep.subr.bf16.mxu0 %v408
    %461 = vmatpush1.bf16.msra.mxu0 %v407
    %462 = vmatprep.subr.bf16.mxu0 0
    %463 = vmatpush1.bf16.msra.mxu0 0
    %464 = vmatprep.subr.bf16.mxu0 0
    %465 = vmatpush1.bf16.msra.mxu0 0
    %466 = vmatprep.subr.bf16.mxu0 0
    %467 = vmatpush1.bf16.msra.mxu0 0
    %468 = vmatprep.subr.bf16.mxu0 0
    %469 = vmatpush1.bf16.msra.mxu0 0
    %470 = vmatprep.subr.bf16.mxu0 0
    %471 = vmatpush1.bf16.msra.mxu0 0
    %472 = vmatprep.subr.bf16.mxu0 0
    %473 = vmatpush1.bf16.msra.mxu0 0
    %474 = vmatprep.subr.bf16.mxu0 0
    %475 = vmatpush1.bf16.msra.mxu0 0
    %476 = vmatprep.subr.bf16.mxu0 0
    %477 = vmatpush1.bf16.msra.mxu0 0
    %478 = vmatprep.subr.bf16.mxu0 0
    %479 = vmatpush1.bf16.msra.mxu0 0
    %480 = vmatprep.subr.bf16.mxu0 0
    %481 = vmatpush1.bf16.msra.mxu0 0
    %482 = vmatprep.subr.bf16.mxu0 0
    %483 = vmatpush1.bf16.msra.mxu0 0
    %484 = vmatprep.subr.bf16.mxu0 0
    %485 = vmatpush1.bf16.msra.mxu0 0
    %486 = vmatprep.subr.bf16.mxu0 0
    %487 = vmatpush1.bf16.msra.mxu0 0
    %488 = vmatprep.subr.bf16.mxu0 0
    %489 = vmatpush1.bf16.msra.mxu0 0
    %490 = vmatprep.subr.bf16.mxu0 0
    %491 = vmatpush1.bf16.msra.mxu0 0
    %492 = vmatprep.mubr.bf16.mxu0 0
    %493 = vmatmul.mubr.bf16.gmra.mrb[0].mxu0 %v415
    %v494 = vpop.f32.mrb[0].mxu0
    %v495 = vadd.f32 %v380, %v494
    %v496 = vpop.f32.mrb[0].mxu0
    %v497 = vadd.f32 %v382, %v496
    %v498 = vpop.f32.mrb[0].mxu0
    %v499 = vadd.f32 %v384, %v498
    %v500 = vpop.f32.mrb[0].mxu0
    %v501 = vadd.f32 %v386, %v500
    %502 = vdwg.mxu0
    %v503 = vld [vmem:[%s5] sm:$0xf]
    %v505 = vlaneseq
    %v506 = vshrl.u32 %v505, 7
    %v507 = vsub.s32 0, %v506
    %v508 = vrot.slane %v503, %v507
    %v509 = vlaneseq
    %v510 = vshrl.u32 %v509, 7
    %v511 = vsub.s32 1, %v510
    %v512 = vrot.slane %v503, %v511
    %v513 = vlaneseq
    %v514 = vshrl.u32 %v513, 7
    %v515 = vsub.s32 2, %v514
    %v516 = vrot.slane %v503, %v515
    %v517 = vlaneseq
    %v518 = vshrl.u32 %v517, 7
    %v519 = vsub.s32 3, %v518
    %v520 = vrot.slane %v503, %v519
    %v525 = vadd.f32 %v452, %v508
    %v526 = vadd.f32 %v454, %v512
    %v527 = vadd.f32 %v495, %v516
    %v528 = vadd.f32 %v497, %v520
    %v529 = vadd.f32 %v456, %v508
    %v530 = vadd.f32 %v458, %v512
    %v531 = vadd.f32 %v499, %v516
    %v532 = vadd.f32 %v501, %v520
    %v533 = vld [vmem:[#allocation7] sm:$0xff]
    %v534 = vld [vmem:[#allocation7 + $0x8] sm:$0xff]
    %v535 = vmul.f32 %v525, 0.5
    %v536 = vmul.f32 %v529, 0.5
    %v537 = vtanh.pop %v535
    %v538 = vtanh.pop %v536
    %v539 = vmul.f32 %v537, 0.5
    %v540 = vmul.f32 %v538, 0.5
    %v541 = vadd.f32 %v539, 0.5
    %v542 = vadd.f32 %v540, 0.5
    %v543 = vmul.f32 %v526, 0.5
    %v544 = vmul.f32 %v530, 0.5
    %v545 = vtanh.pop %v543
    %v546 = vtanh.pop %v544
    %v547 = vmul.f32 %v545, 0.5
    %v548 = vmul.f32 %v546, 0.5
    %v549 = vadd.f32 %v547, 0.5
    %v550 = vadd.f32 %v548, 0.5
    %v551 = vmul.f32 %v528, 0.5
    %v552 = vmul.f32 %v532, 0.5
    %v553 = vtanh.pop %v551
    %v554 = vtanh.pop %v552
    %v555 = vmul.f32 %v553, 0.5
    %v556 = vmul.f32 %v554, 0.5
    %v557 = vadd.f32 %v555, 0.5
    %v558 = vadd.f32 %v556, 0.5
    %v559 = vtanh.pop %v527
    %v560 = vtanh.pop %v531
    %v561 = vmul.f32 %v549, %v533
    %v562 = vmul.f32 %v550, %v534
    %v563 = vmul.f32 %v541, %v559
    %v564 = vmul.f32 %v542, %v560
    %v565 = vadd.f32 %v561, %v563
    %v566 = vadd.f32 %v562, %v564
    %v567 = vtanh.pop %v565
    %v568 = vtanh.pop %v566
    %v569 = vmul.f32 %v557, %v567
    %v570 = vmul.f32 %v558, %v568
    %571 = vst [vmem:[#allocation11] sm:$0xff] %v569
    %572 = vst [vmem:[#allocation11 + $0x8] sm:$0xff] %v570
    %573 = vst [vmem:[#allocation12] sm:$0xff] %v565
    %574 = vst [vmem:[#allocation12 + $0x8] sm:$0xff] %v566
    // Predicated region
    $region46: #{tpu_custom_call.1} parent=1 // pred_check
      _
    $region47: #{tpu_custom_call.1} parent=1 // pred_check_branch
      %576 = sbr.rel (0) target = $region49
    $region48: #{tpu_custom_call.1} parent=1 // pred_region
      %s578 = ssub.s32 256, 256
      %579 = vsyncadd [#allocation4], %s578
      %s580 = sshll.u32 [#allocation11], 4
      %s581 = int_to_ptr.vmem [resolvable:$true] %s580
      %586 = dma.vmem_to_hbm [thread:$0]  %s581, 256, %s6, [#allocation4], 128, 128, 8
    $region49: #{tpu_custom_call.1} parent=1 // pred_fallthru
      _
    // Predicated region
    $region50: #{tpu_custom_call.1} parent=1 // pred_check
      _
    $region51: #{tpu_custom_call.1} parent=1 // pred_check_branch
      %588 = sbr.rel (0) target = $region53
    $region52: #{tpu_custom_call.1} parent=1 // pred_region
      %s590 = ssub.s32 256, 256
      %591 = vsyncadd [#allocation13], %s590
      %s592 = sshll.u32 [#allocation12], 4
      %s593 = int_to_ptr.vmem [resolvable:$true] %s592
      %598 = dma.vmem_to_hbm [thread:$0]  %s593, 256, %s7, [#allocation13], 128, 128, 8
    $region53: #{tpu_custom_call.1} parent=1 // pred_fallthru
      _
    // Predicated region
    $region54: #{tpu_custom_call.1} parent=1 // pred_check
      _
    $region55: #{tpu_custom_call.1} parent=1 // pred_check_branch
      %600 = sbr.rel (0) target = $region57
    $region56: #{tpu_custom_call.1} parent=1 // pred_region
      %601 = dma.done [#allocation4], 256
    $region57: #{tpu_custom_call.1} parent=1 // pred_fallthru
      _
    // Predicated region
    $region58: #{tpu_custom_call.1} parent=1 // pred_check
      _
    $region59: #{tpu_custom_call.1} parent=1 // pred_check_branch
      %603 = sbr.rel (0) target = $region61
    $region60: #{tpu_custom_call.1} parent=1 // pred_region
      %604 = dma.done [#allocation13], 256
    $region61: #{tpu_custom_call.1} parent=1 // pred_fallthru
      _
    %605 = vsyncpa [#allocation3], 1
    %606 = vsyncpa [#allocation6], 1
    %607 = vsyncpa [#allocation9], 1
    %608 = vsyncpa [#allocation4], 1
    %609 = vsyncpa [#allocation13], 1

</llo_original>
